<compile_context>
chip_gen: v6e
topology: v6e:2x2x1
jax: 0.10.0
libtpu: 0.0.40
codegen_flags: <defaults>
</compile_context>

<pallas_src>
import functools
import math

import jax
import jax.numpy as jnp
import numpy as np
from jax.experimental import pallas as pl
from jax.experimental.pallas import tpu as pltpu

BN_EPS = 1e-3        # ultralytics Conv: nn.BatchNorm2d(c2, eps=0.001)
TEMPERATURE = 0.1    # ContrastiveLoss default


# ----------------------------- Pallas kernel ------------------------------- #

def _fused_kernel(gt_ref, x_ref, w_ref, gamma_ref, beta_ref, o_ref, *,
                  temperature, eps, batch, hw):
    # x_ref:  [Cin, N]  bf16, N = batch*hw, column index = b*hw + hw_idx
    # w_ref:  [Cout, Cin] bf16
    # gamma/beta: [Cout, 1] f32 (VMEM); gt_ref: [B] int32 (SMEM)
    y = jnp.dot(w_ref[...], x_ref[...],
                preferred_element_type=jnp.float32)              # [Cout, N], f32 acc

    # BatchNorm2d training mode: per-channel batch mean / biased variance over N.
    mean = jnp.mean(y, axis=1, keepdims=True)                    # [Cout, 1]
    var = jnp.mean((y - mean) ** 2, axis=1, keepdims=True)       # [Cout, 1]
    z = (y - mean) * jax.lax.rsqrt(var + eps) * gamma_ref[...] + beta_ref[...]
    act = z * jax.nn.sigmoid(z)                                  # SiLU, lane-dense f32

    # sim[i,j] = <act_i, act_j> / T where act_b = act[:, b*hw:(b+1)*hw] (lane-aligned
    # slab).  B is tiny & static -> unrolled pairwise multiply+reduce; no relayout
    # of the [Cout, N] activation into [B, D] is ever materialized.
    sims = [[None] * batch for _ in range(batch)]
    for i in range(batch):
        fi = act[:, i * hw:(i + 1) * hw]
        for j in range(i, batch):
            fj = act[:, j * hw:(j + 1) * hw]
            s = jnp.sum(jnp.sum(fi * fj, axis=1, keepdims=True),
                        axis=0, keepdims=True) / temperature     # (1, 1)
            sims[i][j] = s
            sims[j][i] = s

    # per-row: -log( sum_pos exp(sim) / sum_all exp(sim) ), row-max subtracted.
    loss = jnp.zeros((1, 1), jnp.float32)
    for i in range(batch):
        m = sims[i][0]
        for j in range(1, batch):
            m = jnp.maximum(m, sims[i][j])
        num = jnp.zeros((1, 1), jnp.float32)
        tot = jnp.zeros((1, 1), jnp.float32)
        gi = gt_ref[i]
        for j in range(batch):
            e = jnp.exp(sims[i][j] - m)
            pos = (gt_ref[j] == gi).astype(jnp.float32)          # scalar 0/1 from SMEM
            tot = tot + e
            num = num + e * pos
        loss = loss + (jnp.log(tot) - jnp.log(num))
    o_ref[...] = loss / batch


def fused_conv_bn_silu_contrastive(gt_ids, x_t, w, gamma_2d, beta_2d, *,
                                   batch, hw, temperature=TEMPERATURE, eps=BN_EPS):
    cin, n = x_t.shape
    cout = w.shape[0]
    cost = pl.CostEstimate(
        flops=2 * cout * cin * n + 2 * batch * batch * cout * hw + 10 * cout * n,
        transcendentals=cout * n + batch * batch,
        bytes_accessed=(x_t.size * x_t.dtype.itemsize + w.size * w.dtype.itemsize
                        + 2 * cout * 4 + batch * 4 + 4))
    out = pl.pallas_call(
        functools.partial(_fused_kernel, temperature=temperature, eps=eps,
                          batch=batch, hw=hw),
        out_shape=jax.ShapeDtypeStruct((1, 1), jnp.float32),
        in_specs=[
            pl.BlockSpec(memory_space=pltpu.MemorySpace.SMEM),   # gt_ids
            pl.BlockSpec(memory_space=pltpu.MemorySpace.VMEM),   # x_t  [Cin, N] bf16
            pl.BlockSpec(memory_space=pltpu.MemorySpace.VMEM),   # w    [Cout, Cin] bf16
            pl.BlockSpec(memory_space=pltpu.MemorySpace.VMEM),   # gamma [Cout, 1]
            pl.BlockSpec(memory_space=pltpu.MemorySpace.VMEM),   # beta  [Cout, 1]
        ],
        out_specs=pl.BlockSpec(memory_space=pltpu.MemorySpace.VMEM),
        cost_estimate=cost,
    )(gt_ids, x_t, w, gamma_2d, beta_2d)
    return out[0, 0]


# ------------------------------- JAX glue ---------------------------------- #

def extract_bbox_feature(feature, bbox):
    # feature: [B, C, H, W]; bbox: python floats [cx, cy, w, h] (host-side int(), as in torch)
    _, _, H, W = feature.shape
    cx, cy, w, h = bbox
    x1 = int((cx - w / 2) * W)
    y1 = int((cy - h / 2) * H)
    x2 = int((cx + w / 2) * W)
    y2 = int((cy + h / 2) * H)
    return feature[:, :, y1:y2, x1:x2]


def bilinear_resize_nchw(x, out_h, out_w):
    # matches F.interpolate(mode="bilinear", align_corners=False)
    _, _, h, w = x.shape
    if (h, w) == (out_h, out_w):
        return x

    def src(dst_size, in_size):
        scale = in_size / dst_size
        s = (jnp.arange(dst_size, dtype=jnp.float32) + 0.5) * scale - 0.5
        s = jnp.maximum(s, 0.0)
        i0 = jnp.minimum(jnp.floor(s).astype(jnp.int32), in_size - 1)
        i1 = jnp.minimum(i0 + 1, in_size - 1)
        return i0, i1, s - i0.astype(jnp.float32)

    y0, y1, fy = src(out_h, h)
    x0, x1, fx = src(out_w, w)
    top = x[:, :, y0, :]
    bot = x[:, :, y1, :]

    def horiz(t):
        return t[:, :, :, x0] * (1.0 - fx) + t[:, :, :, x1] * fx

    fy = fy[None, None, :, None]
    return horiz(top) * (1.0 - fy) + horiz(bot) * fy


def _build_fused_feature(features, bboxes):
    h0, w0 = features[0].shape[2], features[0].shape[3]
    aligned = []
    for i, (feature, bbox) in enumerate(zip(features, bboxes)):
        crop = extract_bbox_feature(feature, bbox)
        if i > 0:
            crop = bilinear_resize_nchw(crop, h0, w0)
        aligned.append(crop)
    return jnp.concatenate(aligned, axis=1), h0, w0        # [B, sum(C), H0, W0]


def bbox_feature_extractor_forward(features, bboxes, gt_ids, w_oc_ic, gamma, beta):
    fused, h0, w0 = _build_fused_feature(features, bboxes)
    b, cin, _, _ = fused.shape
    hw = h0 * w0
    cout = w_oc_ic.shape[0]

    # Transposed, lane-dense layout [Cin, B*HW]; only a B<->C swap (minor dim kept).
    x_t = jnp.transpose(fused.reshape(b, cin, hw), (1, 0, 2)).reshape(cin, b * hw)
    x_t = x_t.astype(jnp.bfloat16)
    w_bf = w_oc_ic.astype(jnp.bfloat16)

    return fused_conv_bn_silu_contrastive(
        gt_ids.astype(jnp.int32), x_t, w_bf,
        gamma.reshape(cout, 1).astype(jnp.float32),
        beta.reshape(cout, 1).astype(jnp.float32),
        batch=b, hw=hw)


def reference_forward(features, bboxes, gt_ids, w_oc_ic, gamma, beta):
    # Pure-JAX reference.  It uses the same bf16 quantization of the conv inputs
    # (f32 accumulation), so the comparison checks the kernel implementation
    # rather than the bf16 rounding itself; loss uses the same (mathematically
    # identical) log-sum-exp stabilized formulation.
    fused, h0, w0 = _build_fused_feature(features, bboxes)
    b = fused.shape[0]
    xb = fused.astype(jnp.bfloat16).astype(jnp.float32)
    wb = w_oc_ic.astype(jnp.bfloat16).astype(jnp.float32)
    y = jnp.einsum("bchw,oc->bohw", xb, wb)
    mean = jnp.mean(y, axis=(0, 2, 3), keepdims=True)
    var = jnp.mean((y - mean) ** 2, axis=(0, 2, 3), keepdims=True)
    z = (y - mean) / jnp.sqrt(var + BN_EPS) * gamma.reshape(1, -1, 1, 1) \
        + beta.reshape(1, -1, 1, 1)
    act = z * jax.nn.sigmoid(z)
    f = act.reshape(b, -1)
    sim = f @ f.T / TEMPERATURE
    m = jnp.max(sim, axis=1, keepdims=True)
    e = jnp.exp(sim - m)
    pos = gt_ids[:, None] == gt_ids[None, :]
    num = jnp.sum(jnp.where(pos, e, 0.0), axis=1)
    tot = jnp.sum(e, axis=1)
    return jnp.mean(jnp.log(tot) - jnp.log(num))


# --------------------------------- main ------------------------------------ #

if __name__ == "__main__":
    key = jax.random.PRNGKey(0)
    feature_channels = [4, 8, 16, 8]           # [C0, C1, C2, C3]
    cin, cout = sum(feature_channels), 2 * max(feature_channels)
    B = 4
    spatial = [(16, 16), (8, 8), (4, 4), (4, 4)]

    keys = jax.random.split(key, len(feature_channels) + 1)
    features = [jax.random.normal(keys[i], (B, c, h, w), dtype=jnp.float32)
                for i, (c, (h, w)) in enumerate(zip(feature_channels, spatial))]

    # One bbox per scale (the reference zips features with bboxes); the scale-0
    # bbox covers the full map so its (un-interpolated) crop matches (H0, W0).
    bboxes = [
        [0.5, 0.5, 1.0, 1.0],
        [0.5, 0.5, 0.75, 0.75],
        [0.5, 0.5, 1.0, 1.0],
        [0.375, 0.375, 0.5, 0.75],
    ]
    gt_ids = jnp.array([0, 1, 0, 2], dtype=jnp.int32)

    # Synthetic params: Conv(c1, c2, k=1, bias=False) weight [Cout, Cin]; BN gamma/beta.
    # gamma chosen so the D=8192-dim similarities have O(1) spread after /T (the loss
    # itself is now LSE-stabilized, so no overflow either way).
    w_oc_ic = 0.1 * jax.random.normal(keys[-1], (cout, cin), dtype=jnp.float32)
    gamma = jnp.full((cout,), 0.01, dtype=jnp.float32)
    beta = jnp.full((cout,), 0.05, dtype=jnp.float32)

    loss = bbox_feature_extractor_forward(features, bboxes, gt_ids, w_oc_ic, gamma, beta)
    loss = jax.block_until_ready(loss)

    ref = reference_forward(features, bboxes, gt_ids, w_oc_ic, gamma, beta)
    ref = jax.block_until_ready(ref)

    assert math.isfinite(float(loss))
    assert np.allclose(float(loss), float(ref), rtol=5e-2, atol=5e-2), (float(loss), float(ref))
    print("KERNEL_OK")
</pallas_src>

<mosaic_0001>
module attributes {stable_mosaic.version = 11 : i64} {
  func.func @_fused_kernel(%arg0: memref<4xi32, #tpu.memory_space<smem>>, %arg1: memref<36x1024xbf16, #tpu.memory_space<vmem>>, %arg2: memref<32x36xbf16, #tpu.memory_space<vmem>>, %arg3: memref<32x1xf32, #tpu.memory_space<vmem>>, %arg4: memref<32x1xf32, #tpu.memory_space<vmem>>, %arg5: memref<1x1xf32, #tpu.memory_space<vmem>>) attributes {dimension_semantics = [], scalar_prefetch = 0 : i64, scratch_operands = 0 : i64, tpu.core_type = #tpu.core_type<tc>} {
    %c0 = arith.constant 0 : index
    %c0_0 = arith.constant 0 : index
    %0 = vector.load %arg2[%c0, %c0_0] : memref<32x36xbf16, #tpu.memory_space<vmem>>, vector<32x36xbf16>
    %c0_1 = arith.constant 0 : index
    %c0_2 = arith.constant 0 : index
    %1 = vector.load %arg1[%c0_1, %c0_2] : memref<36x1024xbf16, #tpu.memory_space<vmem>>, vector<36x1024xbf16>
    %cst = arith.constant dense<0.000000e+00> : vector<32x1024xf32>
    %2 = tpu.matmul %0, %1, %cst {dimension_numbers = #tpu.dot_dimension_numbers<[1], [0], [0], [1], [0, 0, 1, 1], [], []>} : vector<32x36xbf16>, vector<36x1024xbf16>, vector<32x1024xf32> -> vector<32x1024xf32>
    %cst_3 = arith.constant dense<0.000000e+00> : vector<32xf32>
    %3 = vector.multi_reduction <add>, %2, %cst_3 [1] : vector<32x1024xf32> to vector<32xf32>
    %4 = vector.shape_cast %3 : vector<32xf32> to vector<32x1xf32>
    %cst_4 = arith.constant 1.024000e+03 : f32
    %5 = vector.broadcast %cst_4 : f32 to vector<32x1xf32>
    %6 = arith.divf %4, %5 : vector<32x1xf32>
    %7 = vector.broadcast %6 : vector<32x1xf32> to vector<32x1024xf32>
    %8 = arith.subf %2, %7 : vector<32x1024xf32>
    %9 = arith.mulf %8, %8 : vector<32x1024xf32>
    %cst_5 = arith.constant dense<0.000000e+00> : vector<32xf32>
    %10 = vector.multi_reduction <add>, %9, %cst_5 [1] : vector<32x1024xf32> to vector<32xf32>
    %11 = vector.shape_cast %10 : vector<32xf32> to vector<32x1xf32>
    %cst_6 = arith.constant 1.024000e+03 : f32
    %12 = vector.broadcast %cst_6 : f32 to vector<32x1xf32>
    %13 = arith.divf %11, %12 : vector<32x1xf32>
    %14 = vector.broadcast %6 : vector<32x1xf32> to vector<32x1024xf32>
    %15 = arith.subf %2, %14 : vector<32x1024xf32>
    %cst_7 = arith.constant 1.000000e-03 : f32
    %16 = vector.broadcast %cst_7 : f32 to vector<32x1xf32>
    %17 = arith.addf %13, %16 : vector<32x1xf32>
    %18 = math.rsqrt %17 : vector<32x1xf32>
    %19 = vector.broadcast %18 : vector<32x1xf32> to vector<32x1024xf32>
    %20 = arith.mulf %15, %19 : vector<32x1024xf32>
    %c0_8 = arith.constant 0 : index
    %c0_9 = arith.constant 0 : index
    %21 = vector.load %arg3[%c0_8, %c0_9] : memref<32x1xf32, #tpu.memory_space<vmem>>, vector<32x1xf32>
    %22 = vector.broadcast %21 : vector<32x1xf32> to vector<32x1024xf32>
    %23 = arith.mulf %20, %22 : vector<32x1024xf32>
    %c0_10 = arith.constant 0 : index
    %c0_11 = arith.constant 0 : index
    %24 = vector.load %arg4[%c0_10, %c0_11] : memref<32x1xf32, #tpu.memory_space<vmem>>, vector<32x1xf32>
    %25 = vector.broadcast %24 : vector<32x1xf32> to vector<32x1024xf32>
    %26 = arith.addf %23, %25 : vector<32x1024xf32>
    %27 = arith.negf %26 : vector<32x1024xf32>
    %28 = math.exp %27 : vector<32x1024xf32>
    %cst_12 = arith.constant 1.000000e+00 : f32
    %29 = vector.broadcast %cst_12 : f32 to vector<32x1024xf32>
    %30 = arith.addf %29, %28 : vector<32x1024xf32>
    %31 = arith.divf %29, %30 : vector<32x1024xf32>
    %32 = arith.mulf %26, %31 : vector<32x1024xf32>
    %33 = vector.extract_strided_slice %32 {offsets = [0, 0], sizes = [32, 256], strides = [1, 1]} : vector<32x1024xf32> to vector<32x256xf32>
    %34 = vector.extract_strided_slice %32 {offsets = [0, 0], sizes = [32, 256], strides = [1, 1]} : vector<32x1024xf32> to vector<32x256xf32>
    %35 = arith.mulf %33, %34 : vector<32x256xf32>
    %cst_13 = arith.constant dense<0.000000e+00> : vector<32xf32>
    %36 = vector.multi_reduction <add>, %35, %cst_13 [1] : vector<32x256xf32> to vector<32xf32>
    %37 = vector.shape_cast %36 : vector<32xf32> to vector<32x1xf32>
    %cst_14 = arith.constant dense<0.000000e+00> : vector<1xf32>
    %38 = vector.multi_reduction <add>, %37, %cst_14 [0] : vector<32x1xf32> to vector<1xf32>
    %39 = vector.shape_cast %38 : vector<1xf32> to vector<1x1xf32>
    %cst_15 = arith.constant 1.000000e-01 : f32
    %40 = vector.broadcast %cst_15 : f32 to vector<1x1xf32>
    %41 = arith.divf %39, %40 : vector<1x1xf32>
    %42 = vector.extract_strided_slice %32 {offsets = [0, 256], sizes = [32, 256], strides = [1, 1]} : vector<32x1024xf32> to vector<32x256xf32>
    %43 = arith.mulf %33, %42 : vector<32x256xf32>
    %cst_16 = arith.constant dense<0.000000e+00> : vector<32xf32>
    %44 = vector.multi_reduction <add>, %43, %cst_16 [1] : vector<32x256xf32> to vector<32xf32>
    %45 = vector.shape_cast %44 : vector<32xf32> to vector<32x1xf32>
    %cst_17 = arith.constant dense<0.000000e+00> : vector<1xf32>
    %46 = vector.multi_reduction <add>, %45, %cst_17 [0] : vector<32x1xf32> to vector<1xf32>
    %47 = vector.shape_cast %46 : vector<1xf32> to vector<1x1xf32>
    %cst_18 = arith.constant 1.000000e-01 : f32
    %48 = vector.broadcast %cst_18 : f32 to vector<1x1xf32>
    %49 = arith.divf %47, %48 : vector<1x1xf32>
    %50 = vector.extract_strided_slice %32 {offsets = [0, 512], sizes = [32, 256], strides = [1, 1]} : vector<32x1024xf32> to vector<32x256xf32>
    %51 = arith.mulf %33, %50 : vector<32x256xf32>
    %cst_19 = arith.constant dense<0.000000e+00> : vector<32xf32>
    %52 = vector.multi_reduction <add>, %51, %cst_19 [1] : vector<32x256xf32> to vector<32xf32>
    %53 = vector.shape_cast %52 : vector<32xf32> to vector<32x1xf32>
    %cst_20 = arith.constant dense<0.000000e+00> : vector<1xf32>
    %54 = vector.multi_reduction <add>, %53, %cst_20 [0] : vector<32x1xf32> to vector<1xf32>
    %55 = vector.shape_cast %54 : vector<1xf32> to vector<1x1xf32>
    %cst_21 = arith.constant 1.000000e-01 : f32
    %56 = vector.broadcast %cst_21 : f32 to vector<1x1xf32>
    %57 = arith.divf %55, %56 : vector<1x1xf32>
    %58 = vector.extract_strided_slice %32 {offsets = [0, 768], sizes = [32, 256], strides = [1, 1]} : vector<32x1024xf32> to vector<32x256xf32>
    %59 = arith.mulf %33, %58 : vector<32x256xf32>
    %cst_22 = arith.constant dense<0.000000e+00> : vector<32xf32>
    %60 = vector.multi_reduction <add>, %59, %cst_22 [1] : vector<32x256xf32> to vector<32xf32>
    %61 = vector.shape_cast %60 : vector<32xf32> to vector<32x1xf32>
    %cst_23 = arith.constant dense<0.000000e+00> : vector<1xf32>
    %62 = vector.multi_reduction <add>, %61, %cst_23 [0] : vector<32x1xf32> to vector<1xf32>
    %63 = vector.shape_cast %62 : vector<1xf32> to vector<1x1xf32>
    %cst_24 = arith.constant 1.000000e-01 : f32
    %64 = vector.broadcast %cst_24 : f32 to vector<1x1xf32>
    %65 = arith.divf %63, %64 : vector<1x1xf32>
    %66 = vector.extract_strided_slice %32 {offsets = [0, 256], sizes = [32, 256], strides = [1, 1]} : vector<32x1024xf32> to vector<32x256xf32>
    %67 = vector.extract_strided_slice %32 {offsets = [0, 256], sizes = [32, 256], strides = [1, 1]} : vector<32x1024xf32> to vector<32x256xf32>
    %68 = arith.mulf %66, %67 : vector<32x256xf32>
    %cst_25 = arith.constant dense<0.000000e+00> : vector<32xf32>
    %69 = vector.multi_reduction <add>, %68, %cst_25 [1] : vector<32x256xf32> to vector<32xf32>
    %70 = vector.shape_cast %69 : vector<32xf32> to vector<32x1xf32>
    %cst_26 = arith.constant dense<0.000000e+00> : vector<1xf32>
    %71 = vector.multi_reduction <add>, %70, %cst_26 [0] : vector<32x1xf32> to vector<1xf32>
    %72 = vector.shape_cast %71 : vector<1xf32> to vector<1x1xf32>
    %cst_27 = arith.constant 1.000000e-01 : f32
    %73 = vector.broadcast %cst_27 : f32 to vector<1x1xf32>
    %74 = arith.divf %72, %73 : vector<1x1xf32>
    %75 = vector.extract_strided_slice %32 {offsets = [0, 512], sizes = [32, 256], strides = [1, 1]} : vector<32x1024xf32> to vector<32x256xf32>
    %76 = arith.mulf %66, %75 : vector<32x256xf32>
    %cst_28 = arith.constant dense<0.000000e+00> : vector<32xf32>
    %77 = vector.multi_reduction <add>, %76, %cst_28 [1] : vector<32x256xf32> to vector<32xf32>
    %78 = vector.shape_cast %77 : vector<32xf32> to vector<32x1xf32>
    %cst_29 = arith.constant dense<0.000000e+00> : vector<1xf32>
    %79 = vector.multi_reduction <add>, %78, %cst_29 [0] : vector<32x1xf32> to vector<1xf32>
    %80 = vector.shape_cast %79 : vector<1xf32> to vector<1x1xf32>
    %cst_30 = arith.constant 1.000000e-01 : f32
    %81 = vector.broadcast %cst_30 : f32 to vector<1x1xf32>
    %82 = arith.divf %80, %81 : vector<1x1xf32>
    %83 = vector.extract_strided_slice %32 {offsets = [0, 768], sizes = [32, 256], strides = [1, 1]} : vector<32x1024xf32> to vector<32x256xf32>
    %84 = arith.mulf %66, %83 : vector<32x256xf32>
    %cst_31 = arith.constant dense<0.000000e+00> : vector<32xf32>
    %85 = vector.multi_reduction <add>, %84, %cst_31 [1] : vector<32x256xf32> to vector<32xf32>
    %86 = vector.shape_cast %85 : vector<32xf32> to vector<32x1xf32>
    %cst_32 = arith.constant dense<0.000000e+00> : vector<1xf32>
    %87 = vector.multi_reduction <add>, %86, %cst_32 [0] : vector<32x1xf32> to vector<1xf32>
    %88 = vector.shape_cast %87 : vector<1xf32> to vector<1x1xf32>
    %cst_33 = arith.constant 1.000000e-01 : f32
    %89 = vector.broadcast %cst_33 : f32 to vector<1x1xf32>
    %90 = arith.divf %88, %89 : vector<1x1xf32>
    %91 = vector.extract_strided_slice %32 {offsets = [0, 512], sizes = [32, 256], strides = [1, 1]} : vector<32x1024xf32> to vector<32x256xf32>
    %92 = vector.extract_strided_slice %32 {offsets = [0, 512], sizes = [32, 256], strides = [1, 1]} : vector<32x1024xf32> to vector<32x256xf32>
    %93 = arith.mulf %91, %92 : vector<32x256xf32>
    %cst_34 = arith.constant dense<0.000000e+00> : vector<32xf32>
    %94 = vector.multi_reduction <add>, %93, %cst_34 [1] : vector<32x256xf32> to vector<32xf32>
    %95 = vector.shape_cast %94 : vector<32xf32> to vector<32x1xf32>
    %cst_35 = arith.constant dense<0.000000e+00> : vector<1xf32>
    %96 = vector.multi_reduction <add>, %95, %cst_35 [0] : vector<32x1xf32> to vector<1xf32>
    %97 = vector.shape_cast %96 : vector<1xf32> to vector<1x1xf32>
    %cst_36 = arith.constant 1.000000e-01 : f32
    %98 = vector.broadcast %cst_36 : f32 to vector<1x1xf32>
    %99 = arith.divf %97, %98 : vector<1x1xf32>
    %100 = vector.extract_strided_slice %32 {offsets = [0, 768], sizes = [32, 256], strides = [1, 1]} : vector<32x1024xf32> to vector<32x256xf32>
    %101 = arith.mulf %91, %100 : vector<32x256xf32>
    %cst_37 = arith.constant dense<0.000000e+00> : vector<32xf32>
    %102 = vector.multi_reduction <add>, %101, %cst_37 [1] : vector<32x256xf32> to vector<32xf32>
    %103 = vector.shape_cast %102 : vector<32xf32> to vector<32x1xf32>
    %cst_38 = arith.constant dense<0.000000e+00> : vector<1xf32>
    %104 = vector.multi_reduction <add>, %103, %cst_38 [0] : vector<32x1xf32> to vector<1xf32>
    %105 = vector.shape_cast %104 : vector<1xf32> to vector<1x1xf32>
    %cst_39 = arith.constant 1.000000e-01 : f32
    %106 = vector.broadcast %cst_39 : f32 to vector<1x1xf32>
    %107 = arith.divf %105, %106 : vector<1x1xf32>
    %108 = vector.extract_strided_slice %32 {offsets = [0, 768], sizes = [32, 256], strides = [1, 1]} : vector<32x1024xf32> to vector<32x256xf32>
    %109 = vector.extract_strided_slice %32 {offsets = [0, 768], sizes = [32, 256], strides = [1, 1]} : vector<32x1024xf32> to vector<32x256xf32>
    %110 = arith.mulf %108, %109 : vector<32x256xf32>
    %cst_40 = arith.constant dense<0.000000e+00> : vector<32xf32>
    %111 = vector.multi_reduction <add>, %110, %cst_40 [1] : vector<32x256xf32> to vector<32xf32>
    %112 = vector.shape_cast %111 : vector<32xf32> to vector<32x1xf32>
    %cst_41 = arith.constant dense<0.000000e+00> : vector<1xf32>
    %113 = vector.multi_reduction <add>, %112, %cst_41 [0] : vector<32x1xf32> to vector<1xf32>
    %114 = vector.shape_cast %113 : vector<1xf32> to vector<1x1xf32>
    %cst_42 = arith.constant 1.000000e-01 : f32
    %115 = vector.broadcast %cst_42 : f32 to vector<1x1xf32>
    %116 = arith.divf %114, %115 : vector<1x1xf32>
    %cst_43 = arith.constant 0.000000e+00 : f32
    %117 = vector.broadcast %cst_43 : f32 to vector<1x1xf32>
    %118 = arith.maximumf %41, %49 : vector<1x1xf32>
    %119 = arith.maximumf %118, %57 : vector<1x1xf32>
    %120 = arith.maximumf %119, %65 : vector<1x1xf32>
    %cst_44 = arith.constant 0.000000e+00 : f32
    %121 = vector.broadcast %cst_44 : f32 to vector<1x1xf32>
    %cst_45 = arith.constant 0.000000e+00 : f32
    %122 = vector.broadcast %cst_45 : f32 to vector<1x1xf32>
    %c0_46 = arith.constant 0 : index
    %123 = memref.load %arg0[%c0_46] : memref<4xi32, #tpu.memory_space<smem>>
    %124 = arith.subf %41, %120 : vector<1x1xf32>
    %125 = math.exp %124 : vector<1x1xf32>
    %c0_47 = arith.constant 0 : index
    %126 = memref.load %arg0[%c0_47] : memref<4xi32, #tpu.memory_space<smem>>
    %127 = arith.cmpi eq, %126, %123 : i32
    %128 = arith.extui %127 : i1 to i32
    %129 = arith.sitofp %128 : i32 to f32
    %130 = arith.addf %122, %125 : vector<1x1xf32>
    %131 = vector.broadcast %129 : f32 to vector<1x1xf32>
    %132 = arith.mulf %125, %131 : vector<1x1xf32>
    %133 = arith.addf %121, %132 : vector<1x1xf32>
    %134 = arith.subf %49, %120 : vector<1x1xf32>
    %135 = math.exp %134 : vector<1x1xf32>
    %c1 = arith.constant 1 : index
    %136 = memref.load %arg0[%c1] : memref<4xi32, #tpu.memory_space<smem>>
    %137 = arith.cmpi eq, %136, %123 : i32
    %138 = arith.extui %137 : i1 to i32
    %139 = arith.sitofp %138 : i32 to f32
    %140 = arith.addf %130, %135 : vector<1x1xf32>
    %141 = vector.broadcast %139 : f32 to vector<1x1xf32>
    %142 = arith.mulf %135, %141 : vector<1x1xf32>
    %143 = arith.addf %133, %142 : vector<1x1xf32>
    %144 = arith.subf %57, %120 : vector<1x1xf32>
    %145 = math.exp %144 : vector<1x1xf32>
    %c2 = arith.constant 2 : index
    %146 = memref.load %arg0[%c2] : memref<4xi32, #tpu.memory_space<smem>>
    %147 = arith.cmpi eq, %146, %123 : i32
    %148 = arith.extui %147 : i1 to i32
    %149 = arith.sitofp %148 : i32 to f32
    %150 = arith.addf %140, %145 : vector<1x1xf32>
    %151 = vector.broadcast %149 : f32 to vector<1x1xf32>
    %152 = arith.mulf %145, %151 : vector<1x1xf32>
    %153 = arith.addf %143, %152 : vector<1x1xf32>
    %154 = arith.subf %65, %120 : vector<1x1xf32>
    %155 = math.exp %154 : vector<1x1xf32>
    %c3 = arith.constant 3 : index
    %156 = memref.load %arg0[%c3] : memref<4xi32, #tpu.memory_space<smem>>
    %157 = arith.cmpi eq, %156, %123 : i32
    %158 = arith.extui %157 : i1 to i32
    %159 = arith.sitofp %158 : i32 to f32
    %160 = arith.addf %150, %155 : vector<1x1xf32>
    %161 = vector.broadcast %159 : f32 to vector<1x1xf32>
    %162 = arith.mulf %155, %161 : vector<1x1xf32>
    %163 = arith.addf %153, %162 : vector<1x1xf32>
    %164 = math.log %160 : vector<1x1xf32>
    %165 = math.log %163 : vector<1x1xf32>
    %166 = arith.subf %164, %165 : vector<1x1xf32>
    %167 = arith.addf %117, %166 : vector<1x1xf32>
    %168 = arith.maximumf %49, %74 : vector<1x1xf32>
    %169 = arith.maximumf %168, %82 : vector<1x1xf32>
    %170 = arith.maximumf %169, %90 : vector<1x1xf32>
    %cst_48 = arith.constant 0.000000e+00 : f32
    %171 = vector.broadcast %cst_48 : f32 to vector<1x1xf32>
    %cst_49 = arith.constant 0.000000e+00 : f32
    %172 = vector.broadcast %cst_49 : f32 to vector<1x1xf32>
    %c1_50 = arith.constant 1 : index
    %173 = memref.load %arg0[%c1_50] : memref<4xi32, #tpu.memory_space<smem>>
    %174 = arith.subf %49, %170 : vector<1x1xf32>
    %175 = math.exp %174 : vector<1x1xf32>
    %c0_51 = arith.constant 0 : index
    %176 = memref.load %arg0[%c0_51] : memref<4xi32, #tpu.memory_space<smem>>
    %177 = arith.cmpi eq, %176, %173 : i32
    %178 = arith.extui %177 : i1 to i32
    %179 = arith.sitofp %178 : i32 to f32
    %180 = arith.addf %172, %175 : vector<1x1xf32>
    %181 = vector.broadcast %179 : f32 to vector<1x1xf32>
    %182 = arith.mulf %175, %181 : vector<1x1xf32>
    %183 = arith.addf %171, %182 : vector<1x1xf32>
    %184 = arith.subf %74, %170 : vector<1x1xf32>
    %185 = math.exp %184 : vector<1x1xf32>
    %c1_52 = arith.constant 1 : index
    %186 = memref.load %arg0[%c1_52] : memref<4xi32, #tpu.memory_space<smem>>
    %187 = arith.cmpi eq, %186, %173 : i32
    %188 = arith.extui %187 : i1 to i32
    %189 = arith.sitofp %188 : i32 to f32
    %190 = arith.addf %180, %185 : vector<1x1xf32>
    %191 = vector.broadcast %189 : f32 to vector<1x1xf32>
    %192 = arith.mulf %185, %191 : vector<1x1xf32>
    %193 = arith.addf %183, %192 : vector<1x1xf32>
    %194 = arith.subf %82, %170 : vector<1x1xf32>
    %195 = math.exp %194 : vector<1x1xf32>
    %c2_53 = arith.constant 2 : index
    %196 = memref.load %arg0[%c2_53] : memref<4xi32, #tpu.memory_space<smem>>
    %197 = arith.cmpi eq, %196, %173 : i32
    %198 = arith.extui %197 : i1 to i32
    %199 = arith.sitofp %198 : i32 to f32
    %200 = arith.addf %190, %195 : vector<1x1xf32>
    %201 = vector.broadcast %199 : f32 to vector<1x1xf32>
    %202 = arith.mulf %195, %201 : vector<1x1xf32>
    %203 = arith.addf %193, %202 : vector<1x1xf32>
    %204 = arith.subf %90, %170 : vector<1x1xf32>
    %205 = math.exp %204 : vector<1x1xf32>
    %c3_54 = arith.constant 3 : index
    %206 = memref.load %arg0[%c3_54] : memref<4xi32, #tpu.memory_space<smem>>
    %207 = arith.cmpi eq, %206, %173 : i32
    %208 = arith.extui %207 : i1 to i32
    %209 = arith.sitofp %208 : i32 to f32
    %210 = arith.addf %200, %205 : vector<1x1xf32>
    %211 = vector.broadcast %209 : f32 to vector<1x1xf32>
    %212 = arith.mulf %205, %211 : vector<1x1xf32>
    %213 = arith.addf %203, %212 : vector<1x1xf32>
    %214 = math.log %210 : vector<1x1xf32>
    %215 = math.log %213 : vector<1x1xf32>
    %216 = arith.subf %214, %215 : vector<1x1xf32>
    %217 = arith.addf %167, %216 : vector<1x1xf32>
    %218 = arith.maximumf %57, %82 : vector<1x1xf32>
    %219 = arith.maximumf %218, %99 : vector<1x1xf32>
    %220 = arith.maximumf %219, %107 : vector<1x1xf32>
    %cst_55 = arith.constant 0.000000e+00 : f32
    %221 = vector.broadcast %cst_55 : f32 to vector<1x1xf32>
    %cst_56 = arith.constant 0.000000e+00 : f32
    %222 = vector.broadcast %cst_56 : f32 to vector<1x1xf32>
    %c2_57 = arith.constant 2 : index
    %223 = memref.load %arg0[%c2_57] : memref<4xi32, #tpu.memory_space<smem>>
    %224 = arith.subf %57, %220 : vector<1x1xf32>
    %225 = math.exp %224 : vector<1x1xf32>
    %c0_58 = arith.constant 0 : index
    %226 = memref.load %arg0[%c0_58] : memref<4xi32, #tpu.memory_space<smem>>
    %227 = arith.cmpi eq, %226, %223 : i32
    %228 = arith.extui %227 : i1 to i32
    %229 = arith.sitofp %228 : i32 to f32
    %230 = arith.addf %222, %225 : vector<1x1xf32>
    %231 = vector.broadcast %229 : f32 to vector<1x1xf32>
    %232 = arith.mulf %225, %231 : vector<1x1xf32>
    %233 = arith.addf %221, %232 : vector<1x1xf32>
    %234 = arith.subf %82, %220 : vector<1x1xf32>
    %235 = math.exp %234 : vector<1x1xf32>
    %c1_59 = arith.constant 1 : index
    %236 = memref.load %arg0[%c1_59] : memref<4xi32, #tpu.memory_space<smem>>
    %237 = arith.cmpi eq, %236, %223 : i32
    %238 = arith.extui %237 : i1 to i32
    %239 = arith.sitofp %238 : i32 to f32
    %240 = arith.addf %230, %235 : vector<1x1xf32>
    %241 = vector.broadcast %239 : f32 to vector<1x1xf32>
    %242 = arith.mulf %235, %241 : vector<1x1xf32>
    %243 = arith.addf %233, %242 : vector<1x1xf32>
    %244 = arith.subf %99, %220 : vector<1x1xf32>
    %245 = math.exp %244 : vector<1x1xf32>
    %c2_60 = arith.constant 2 : index
    %246 = memref.load %arg0[%c2_60] : memref<4xi32, #tpu.memory_space<smem>>
    %247 = arith.cmpi eq, %246, %223 : i32
    %248 = arith.extui %247 : i1 to i32
    %249 = arith.sitofp %248 : i32 to f32
    %250 = arith.addf %240, %245 : vector<1x1xf32>
    %251 = vector.broadcast %249 : f32 to vector<1x1xf32>
    %252 = arith.mulf %245, %251 : vector<1x1xf32>
    %253 = arith.addf %243, %252 : vector<1x1xf32>
    %254 = arith.subf %107, %220 : vector<1x1xf32>
    %255 = math.exp %254 : vector<1x1xf32>
    %c3_61 = arith.constant 3 : index
    %256 = memref.load %arg0[%c3_61] : memref<4xi32, #tpu.memory_space<smem>>
    %257 = arith.cmpi eq, %256, %223 : i32
    %258 = arith.extui %257 : i1 to i32
    %259 = arith.sitofp %258 : i32 to f32
    %260 = arith.addf %250, %255 : vector<1x1xf32>
    %261 = vector.broadcast %259 : f32 to vector<1x1xf32>
    %262 = arith.mulf %255, %261 : vector<1x1xf32>
    %263 = arith.addf %253, %262 : vector<1x1xf32>
    %264 = math.log %260 : vector<1x1xf32>
    %265 = math.log %263 : vector<1x1xf32>
    %266 = arith.subf %264, %265 : vector<1x1xf32>
    %267 = arith.addf %217, %266 : vector<1x1xf32>
    %268 = arith.maximumf %65, %90 : vector<1x1xf32>
    %269 = arith.maximumf %268, %107 : vector<1x1xf32>
    %270 = arith.maximumf %269, %116 : vector<1x1xf32>
    %cst_62 = arith.constant 0.000000e+00 : f32
    %271 = vector.broadcast %cst_62 : f32 to vector<1x1xf32>
    %cst_63 = arith.constant 0.000000e+00 : f32
    %272 = vector.broadcast %cst_63 : f32 to vector<1x1xf32>
    %c3_64 = arith.constant 3 : index
    %273 = memref.load %arg0[%c3_64] : memref<4xi32, #tpu.memory_space<smem>>
    %274 = arith.subf %65, %270 : vector<1x1xf32>
    %275 = math.exp %274 : vector<1x1xf32>
    %c0_65 = arith.constant 0 : index
    %276 = memref.load %arg0[%c0_65] : memref<4xi32, #tpu.memory_space<smem>>
    %277 = arith.cmpi eq, %276, %273 : i32
    %278 = arith.extui %277 : i1 to i32
    %279 = arith.sitofp %278 : i32 to f32
    %280 = arith.addf %272, %275 : vector<1x1xf32>
    %281 = vector.broadcast %279 : f32 to vector<1x1xf32>
    %282 = arith.mulf %275, %281 : vector<1x1xf32>
    %283 = arith.addf %271, %282 : vector<1x1xf32>
    %284 = arith.subf %90, %270 : vector<1x1xf32>
    %285 = math.exp %284 : vector<1x1xf32>
    %c1_66 = arith.constant 1 : index
    %286 = memref.load %arg0[%c1_66] : memref<4xi32, #tpu.memory_space<smem>>
    %287 = arith.cmpi eq, %286, %273 : i32
    %288 = arith.extui %287 : i1 to i32
    %289 = arith.sitofp %288 : i32 to f32
    %290 = arith.addf %280, %285 : vector<1x1xf32>
    %291 = vector.broadcast %289 : f32 to vector<1x1xf32>
    %292 = arith.mulf %285, %291 : vector<1x1xf32>
    %293 = arith.addf %283, %292 : vector<1x1xf32>
    %294 = arith.subf %107, %270 : vector<1x1xf32>
    %295 = math.exp %294 : vector<1x1xf32>
    %c2_67 = arith.constant 2 : index
    %296 = memref.load %arg0[%c2_67] : memref<4xi32, #tpu.memory_space<smem>>
    %297 = arith.cmpi eq, %296, %273 : i32
    %298 = arith.extui %297 : i1 to i32
    %299 = arith.sitofp %298 : i32 to f32
    %300 = arith.addf %290, %295 : vector<1x1xf32>
    %301 = vector.broadcast %299 : f32 to vector<1x1xf32>
    %302 = arith.mulf %295, %301 : vector<1x1xf32>
    %303 = arith.addf %293, %302 : vector<1x1xf32>
    %304 = arith.subf %116, %270 : vector<1x1xf32>
    %305 = math.exp %304 : vector<1x1xf32>
    %c3_68 = arith.constant 3 : index
    %306 = memref.load %arg0[%c3_68] : memref<4xi32, #tpu.memory_space<smem>>
    %307 = arith.cmpi eq, %306, %273 : i32
    %308 = arith.extui %307 : i1 to i32
    %309 = arith.sitofp %308 : i32 to f32
    %310 = arith.addf %300, %305 : vector<1x1xf32>
    %311 = vector.broadcast %309 : f32 to vector<1x1xf32>
    %312 = arith.mulf %305, %311 : vector<1x1xf32>
    %313 = arith.addf %303, %312 : vector<1x1xf32>
    %314 = math.log %310 : vector<1x1xf32>
    %315 = math.log %313 : vector<1x1xf32>
    %316 = arith.subf %314, %315 : vector<1x1xf32>
    %317 = arith.addf %267, %316 : vector<1x1xf32>
    %cst_69 = arith.constant 4.000000e+00 : f32
    %318 = vector.broadcast %cst_69 : f32 to vector<1x1xf32>
    %319 = arith.divf %317, %318 : vector<1x1xf32>
    %c0_70 = arith.constant 0 : index
    %c0_71 = arith.constant 0 : index
    %320 = vector.load %arg5[%c0_70, %c0_71] : memref<1x1xf32, #tpu.memory_space<vmem>>, vector<1x1xf32>
    tpu.vector_store %arg5[%c0_70, %c0_71], %319 {strides = array<i32>} : memref<1x1xf32, #tpu.memory_space<vmem>>, vector<1x1xf32>,
    return
  }
}

</mosaic_0001>

<llo_original>
// kernel: tpu_custom_call.1
$region0: #{tpu_custom_call.1}
  #allocation0 [shape = 'u32[]', space=smem, size = 0x4, offset = 0x4, fixed_abs, tag = 'smem constant byte address 0x4 - core index']
  #allocation1 [shape = 'u32[144,128]{1,0:T(1,128)}', space=vmem, size = 0x12000, scoped, tag = 'internal scratch']
  %s0 = inlined_call_operand.vmem [shape: s32[4], index: 0, kind: input, shape index: {}]
  %s1 = inlined_call_operand.hbm [shape: bf16[36,1024], index: 1, kind: input, shape index: {}]
  %s2 = inlined_call_operand.vmem [shape: bf16[32,36], index: 2, kind: input, shape index: {}]
  %s3 = inlined_call_operand.vmem [shape: f32[32,1], index: 3, kind: input, shape index: {}]
  %s4 = inlined_call_operand.vmem [shape: f32[32,1], index: 4, kind: input, shape index: {}]
  %s5 = inlined_call_operand.hbm [shape: f32[1,1], index: 5, kind: output, shape index: {}]
  %s6 = sld [smem:[#allocation0]]
  $region38: #{tpu_custom_call.1} parent=0
    _
  %s8 = ssub.s32 1, %s6
  %s9 = scalar_select 0, %s8, %s6
  $region1: #{tpu_custom_call.1} parent=0
    #allocation2 [shape = 'u8[512]{0}', space=smem, size = 0x200, scoped, tag = 'input window, operand 0, single buffered']
    #allocation3 [shape = 's32[1]{0}', space=sflag, size = 0x4, scoped, tag = 'scoped memory for tpu_custom_call.1']
    #allocation4 [shape = 's32[1]{0}', space=sflag, size = 0x4, scoped, tag = 'scoped memory for tpu_custom_call.1']
    #allocation5 [shape = 's32[1]{0}', space=sflag, size = 0x4, scoped, tag = 'scoped memory for tpu_custom_call.1']
    #allocation6 [shape = 'u8[81920]{0}', space=vmem, size = 0x14000, scoped, tag = 'input window, operand 1, single buffered']
    #allocation7 [shape = 'u8[512]{0}', space=vmem, size = 0x400, scoped, tag = 'output window, operand 0, single buffered']
    %10 = vsyncpa [#allocation5], 0
    %11 = vsyncpa [#allocation3], 0
    %12 = vsyncpa [#allocation4], 0
    // Predicated region
    $region2: #{tpu_custom_call.1} parent=1 // pred_check
      _
    $region3: #{tpu_custom_call.1} parent=1 // pred_check_branch
      %14 = sbr.rel (0) target = $region5
    $region4: #{tpu_custom_call.1} parent=1 // pred_region
      %s16 = ssub.s32 16, 16
      %17 = vsyncadd [#allocation5], %s16
      %s19 = sshll.u32 %s0, 4
      %s20 = int_to_ptr.vmem [resolvable:$true] %s19
      %22 = dma.vmem_to_smem %s20, 16, [#allocation2], [#allocation5]
    $region5: #{tpu_custom_call.1} parent=1 // pred_fallthru
      _
    // Predicated region
    $region6: #{tpu_custom_call.1} parent=1 // pred_check
      _
    $region7: #{tpu_custom_call.1} parent=1 // pred_check_branch
      %24 = sbr.rel (0) target = $region9
    $region8: #{tpu_custom_call.1} parent=1 // pred_region
      %s26 = ssub.s32 2560, 2560
      %27 = vsyncadd [#allocation3], %s26
      %s28 = sshll.u32 [#allocation6], 4
      %s29 = int_to_ptr.vmem [resolvable:$true] %s28
      %34 = dma.hbm_to_vmem [thread:$0]  %s1, 2560, %s29, [#allocation3], 512, 512, 32
    $region9: #{tpu_custom_call.1} parent=1 // pred_fallthru
      _
    // Predicated region
    $region10: #{tpu_custom_call.1} parent=1 // pred_check
      _
    $region11: #{tpu_custom_call.1} parent=1 // pred_check_branch
      %36 = sbr.rel (0) target = $region13
    $region12: #{tpu_custom_call.1} parent=1 // pred_region
      _
    $region13: #{tpu_custom_call.1} parent=1 // pred_fallthru
      _
    // Predicated region
    $region14: #{tpu_custom_call.1} parent=1 // pred_check
      _
    $region15: #{tpu_custom_call.1} parent=1 // pred_check_branch
      %38 = sbr.rel (0) target = $region17
    $region16: #{tpu_custom_call.1} parent=1 // pred_region
      _
    $region17: #{tpu_custom_call.1} parent=1 // pred_fallthru
      _
    // Predicated region
    $region18: #{tpu_custom_call.1} parent=1 // pred_check
      _
    $region19: #{tpu_custom_call.1} parent=1 // pred_check_branch
      %40 = sbr.rel (0) target = $region21
    $region20: #{tpu_custom_call.1} parent=1 // pred_region
      _
    $region21: #{tpu_custom_call.1} parent=1 // pred_fallthru
      _
    // Predicated region
    $region22: #{tpu_custom_call.1} parent=1 // pred_check
      _
    $region23: #{tpu_custom_call.1} parent=1 // pred_check_branch
      %42 = sbr.rel (0) target = $region25
    $region24: #{tpu_custom_call.1} parent=1 // pred_region
      %43 = dma.done [#allocation5], 16
    $region25: #{tpu_custom_call.1} parent=1 // pred_fallthru
      _
    // Predicated region
    $region26: #{tpu_custom_call.1} parent=1 // pred_check
      _
    $region27: #{tpu_custom_call.1} parent=1 // pred_check_branch
      %45 = sbr.rel (0) target = $region29
    $region28: #{tpu_custom_call.1} parent=1 // pred_region
      %46 = dma.done [#allocation3], 2560
    $region29: #{tpu_custom_call.1} parent=1 // pred_fallthru
      _
    %47 = sfence
    %v49 = vld [vmem:[%s2] sm:$0xf]
    %v50 = vld [vmem:[%s2 + $0x4] sm:$0xf]
    %v51 = vld [vmem:[%s2 + $0x8] sm:$0xf]
    %v52 = vld [vmem:[%s2 + $0xc] sm:$0xf]
    %v53 = vld [vmem:[#allocation6] sm:$0xff]
    %v54 = vld [vmem:[#allocation6 + $0x8] sm:$0xff]
    %v55 = vld [vmem:[#allocation6 + $0x10] sm:$0xff]
    %v56 = vld [vmem:[#allocation6 + $0x18] sm:$0xff]
    %v57 = vld [vmem:[#allocation6 + $0x20] sm:$0xff]
    %v58 = vld [vmem:[#allocation6 + $0x28] sm:$0xff]
    %v59 = vld [vmem:[#allocation6 + $0x30] sm:$0xff]
    %v60 = vld [vmem:[#allocation6 + $0x38] sm:$0xff]
    %v61 = vld [vmem:[#allocation6 + $0x40] sm:$0xff]
    %v62 = vld [vmem:[#allocation6 + $0x48] sm:$0xff]
    %v63 = vld [vmem:[#allocation6 + $0x50] sm:$0xff]
    %v64 = vld [vmem:[#allocation6 + $0x58] sm:$0xff]
    %v65 = vld [vmem:[#allocation6 + $0x60] sm:$0xff]
    %v66 = vld [vmem:[#allocation6 + $0x68] sm:$0xff]
    %v67 = vld [vmem:[#allocation6 + $0x70] sm:$0xff]
    %v68 = vld [vmem:[#allocation6 + $0x78] sm:$0xff]
    %v69 = vld [vmem:[#allocation6 + $0x80] sm:$0x33]
    %v70 = vld [vmem:[#allocation6 + $0x88] sm:$0x33]
    %v71 = vld [vmem:[#allocation6 + $0x90] sm:$0x33]
    %v72 = vld [vmem:[#allocation6 + $0x98] sm:$0x33]
    %v77 = vunpack.c.l.b16 %v49
    %v78 = vunpack.c.l.b16 %v50
    %v79 = vunpack.c.l.b16 %v51
    %v80 = vunpack.c.l.b16 %v52
    %v81 = vpack.c.b16 %v78, %v77
    %v82 = vpack.c.b16 %v80, %v79
    %v103 = vunpack.c.l.b16 %v53
    %v104 = vunpack.c.h.b16 %v53
    %v105 = vunpack.c.l.b16 %v54
    %v106 = vunpack.c.h.b16 %v54
    %v107 = vunpack.c.l.b16 %v55
    %v108 = vunpack.c.h.b16 %v55
    %v109 = vunpack.c.l.b16 %v56
    %v110 = vunpack.c.h.b16 %v56
    %v111 = vunpack.c.l.b16 %v57
    %v112 = vunpack.c.h.b16 %v57
    %v113 = vunpack.c.l.b16 %v58
    %v114 = vunpack.c.h.b16 %v58
    %v115 = vunpack.c.l.b16 %v59
    %v116 = vunpack.c.h.b16 %v59
    %v117 = vunpack.c.l.b16 %v60
    %v118 = vunpack.c.h.b16 %v60
    %v119 = vunpack.c.l.b16 %v61
    %v120 = vunpack.c.h.b16 %v61
    %v121 = vunpack.c.l.b16 %v62
    %v122 = vunpack.c.h.b16 %v62
    %v123 = vunpack.c.l.b16 %v63
    %v124 = vunpack.c.h.b16 %v63
    %v125 = vunpack.c.l.b16 %v64
    %v126 = vunpack.c.h.b16 %v64
    %v127 = vunpack.c.l.b16 %v65
    %v128 = vunpack.c.h.b16 %v65
    %v129 = vunpack.c.l.b16 %v66
    %v130 = vunpack.c.h.b16 %v66
    %v131 = vunpack.c.l.b16 %v67
    %v132 = vunpack.c.h.b16 %v67
    %v133 = vunpack.c.l.b16 %v68
    %v134 = vunpack.c.h.b16 %v68
    %v135 = vunpack.c.l.b16 %v69
    %v136 = vunpack.c.h.b16 %v69
    %v137 = vunpack.c.l.b16 %v70
    %v138 = vunpack.c.h.b16 %v70
    %v139 = vunpack.c.l.b16 %v71
    %v140 = vunpack.c.h.b16 %v71
    %v141 = vunpack.c.l.b16 %v72
    %v142 = vunpack.c.h.b16 %v72
    %v143 = vpack.c.b16 %v111, %v103
    %v144 = vpack.c.b16 %v112, %v104
    %v145 = vpack.c.b16 %v113, %v105
    %v146 = vpack.c.b16 %v114, %v106
    %v147 = vpack.c.b16 %v115, %v107
    %v148 = vpack.c.b16 %v116, %v108
    %v149 = vpack.c.b16 %v117, %v109
    %v150 = vpack.c.b16 %v118, %v110
    %v151 = vpack.c.b16 %v127, %v119
    %v152 = vpack.c.b16 %v128, %v120
    %v153 = vpack.c.b16 %v129, %v121
    %v154 = vpack.c.b16 %v130, %v122
    %v155 = vpack.c.b16 %v131, %v123
    %v156 = vpack.c.b16 %v132, %v124
    %v157 = vpack.c.b16 %v133, %v125
    %v158 = vpack.c.b16 %v134, %v126
    %v159 = vpack.c.b16 %v135, %v135
    %v160 = vpack.c.b16 %v136, %v136
    %v161 = vpack.c.b16 %v137, %v137
    %v162 = vpack.c.b16 %v138, %v138
    %v163 = vpack.c.b16 %v139, %v139
    %v164 = vpack.c.b16 %v140, %v140
    %v165 = vpack.c.b16 %v141, %v141
    %v166 = vpack.c.b16 %v142, %v142
    %vm183 = vcmask 293888
    %v185 = vsel %vm183, %v81, 0
    %v188 = vsel %vm183, %v82, 0
    %vm190 = vcmask 1041408
    %v192 = vsel %vm190, %v159, 0
    %v195 = vsel %vm190, %v160, 0
    %v198 = vsel %vm190, %v161, 0
    %v201 = vsel %vm190, %v162, 0
    %v204 = vsel %vm190, %v163, 0
    %v207 = vsel %vm190, %v164, 0
    %v210 = vsel %vm190, %v165, 0
    %v213 = vsel %vm190, %v166, 0
    %215 = vmatprep.subr.bf16.mxu0 0
    %216 = vmatpush1.bf16.msra.mxu0 0
    %217 = vmatprep.subr.bf16.mxu0 0
    %218 = vmatpush1.bf16.msra.mxu0 0
    %219 = vmatprep.subr.bf16.mxu0 0
    %220 = vmatpush1.bf16.msra.mxu0 0
    %221 = vmatprep.subr.bf16.mxu0 0
    %222 = vmatpush1.bf16.msra.mxu0 0
    %223 = vmatprep.subr.bf16.mxu0 0
    %224 = vmatpush1.bf16.msra.mxu0 0
    %225 = vmatprep.subr.bf16.mxu0 %v195
    %226 = vmatpush1.bf16.msra.mxu0 %v192
    %227 = vmatprep.subr.bf16.mxu0 %v152
    %228 = vmatpush1.bf16.msra.mxu0 %v151
    %229 = vmatprep.subr.bf16.mxu0 %v144
    %230 = vmatpush1.bf16.msra.mxu0 %v143
    %231 = vmatprep.subr.bf16.mxu0 0
    %232 = vmatpush2.bf16.msra.mxu0 0
    %233 = vmatprep.subr.bf16.mxu0 0
    %234 = vmatpush2.bf16.msra.mxu0 0
    %235 = vmatprep.subr.bf16.mxu0 0
    %236 = vmatpush2.bf16.msra.mxu0 0
    %237 = vmatprep.subr.bf16.mxu0 0
    %238 = vmatpush2.bf16.msra.mxu0 0
    %239 = vmatprep.subr.bf16.mxu0 0
    %240 = vmatpush2.bf16.msra.mxu0 0
    %241 = vmatprep.subr.bf16.mxu0 0
    %242 = vmatpush2.bf16.msra.mxu0 0
    %243 = vmatprep.subr.bf16.mxu0 0
    %244 = vmatpush2.bf16.msra.mxu0 0
    %245 = vmatprep.subr.bf16.mxu0 0
    %246 = vmatpush2.bf16.msra.mxu0 0
    %247 = vmatprep.mubr.bf16.mxu0 0
    %248 = vmatmul.mubr.bf16.gmra.mxu0 %v185
    %v249 = vpop.f32.mrf.mxu0
    %v250 = vadd.f32 0.0, %v249
    %v251 = vpop.f32.mrf.mxu0
    %v252 = vadd.f32 0.0, %v251
    %v253 = vpop.f32.mrf.mxu0
    %v254 = vadd.f32 0.0, %v253
    %v255 = vpop.f32.mrf.mxu0
    %v256 = vadd.f32 0.0, %v255
    %257 = vmatprep.mubr.bf16.mxu0 0
    %258 = vmatmul.mubr.bf16.gmra.mxu0 %v188
    %v259 = vpop.f32.mrf.mxu0
    %v260 = vadd.f32 0.0, %v259
    %v261 = vpop.f32.mrf.mxu0
    %v262 = vadd.f32 0.0, %v261
    %v263 = vpop.f32.mrf.mxu0
    %v264 = vadd.f32 0.0, %v263
    %v265 = vpop.f32.mrf.mxu0
    %v266 = vadd.f32 0.0, %v265
    %267 = vdwg.mxu0
    %268 = vmatprep.subr.bf16.mxu0 0
    %269 = vmatpush1.bf16.msra.mxu0 0
    %270 = vmatprep.subr.bf16.mxu0 0
    %271 = vmatpush1.bf16.msra.mxu0 0
    %272 = vmatprep.subr.bf16.mxu0 0
    %273 = vmatpush1.bf16.msra.mxu0 0
    %274 = vmatprep.subr.bf16.mxu0 0
    %275 = vmatpush1.bf16.msra.mxu0 0
    %276 = vmatprep.subr.bf16.mxu0 0
    %277 = vmatpush1.bf16.msra.mxu0 0
    %278 = vmatprep.subr.bf16.mxu0 %v201
    %279 = vmatpush1.bf16.msra.mxu0 %v198
    %280 = vmatprep.subr.bf16.mxu0 %v154
    %281 = vmatpush1.bf16.msra.mxu0 %v153
    %282 = vmatprep.subr.bf16.mxu0 %v146
    %283 = vmatpush1.bf16.msra.mxu0 %v145
    %284 = vmatprep.subr.bf16.mxu0 0
    %285 = vmatpush2.bf16.msra.mxu0 0
    %286 = vmatprep.subr.bf16.mxu0 0
    %287 = vmatpush2.bf16.msra.mxu0 0
    %288 = vmatprep.subr.bf16.mxu0 0
    %289 = vmatpush2.bf16.msra.mxu0 0
    %290 = vmatprep.subr.bf16.mxu0 0
    %291 = vmatpush2.bf16.msra.mxu0 0
    %292 = vmatprep.subr.bf16.mxu0 0
    %293 = vmatpush2.bf16.msra.mxu0 0
    %294 = vmatprep.subr.bf16.mxu0 0
    %295 = vmatpush2.bf16.msra.mxu0 0
    %296 = vmatprep.subr.bf16.mxu0 0
    %297 = vmatpush2.bf16.msra.mxu0 0
    %298 = vmatprep.subr.bf16.mxu0 0
    %299 = vmatpush2.bf16.msra.mxu0 0
    %300 = vmatprep.mubr.bf16.mxu0 0
    %301 = vmatmul.mubr.bf16.gmra.mxu0 %v185
    %v302 = vpop.f32.mrf.mxu0
    %v303 = vadd.f32 0.0, %v302
    %v304 = vpop.f32.mrf.mxu0
    %v305 = vadd.f32 0.0, %v304
    %v306 = vpop.f32.mrf.mxu0
    %v307 = vadd.f32 0.0, %v306
    %v308 = vpop.f32.mrf.mxu0
    %v309 = vadd.f32 0.0, %v308
    %310 = vmatprep.mubr.bf16.mxu0 0
    %311 = vmatmul.mubr.bf16.gmra.mxu0 %v188
    %v312 = vpop.f32.mrf.mxu0
    %v313 = vadd.f32 0.0, %v312
    %v314 = vpop.f32.mrf.mxu0
    %v315 = vadd.f32 0.0, %v314
    %v316 = vpop.f32.mrf.mxu0
    %v317 = vadd.f32 0.0, %v316
    %v318 = vpop.f32.mrf.mxu0
    %v319 = vadd.f32 0.0, %v318
    %320 = vdwg.mxu0
    %321 = vmatprep.subr.bf16.mxu0 0
    %322 = vmatpush1.bf16.msra.mxu0 0
    %323 = vmatprep.subr.bf16.mxu0 0
    %324 = vmatpush1.bf16.msra.mxu0 0
    %325 = vmatprep.subr.bf16.mxu0 0
    %326 = vmatpush1.bf16.msra.mxu0 0
    %327 = vmatprep.subr.bf16.mxu0 0
    %328 = vmatpush1.bf16.msra.mxu0 0
    %329 = vmatprep.subr.bf16.mxu0 0
    %330 = vmatpush1.bf16.msra.mxu0 0
    %331 = vmatprep.subr.bf16.mxu0 %v207
    %332 = vmatpush1.bf16.msra.mxu0 %v204
    %333 = vmatprep.subr.bf16.mxu0 %v156
    %334 = vmatpush1.bf16.msra.mxu0 %v155
    %335 = vmatprep.subr.bf16.mxu0 %v148
    %336 = vmatpush1.bf16.msra.mxu0 %v147
    %337 = vmatprep.subr.bf16.mxu0 0
    %338 = vmatpush2.bf16.msra.mxu0 0
    %339 = vmatprep.subr.bf16.mxu0 0
    %340 = vmatpush2.bf16.msra.mxu0 0
    %341 = vmatprep.subr.bf16.mxu0 0
    %342 = vmatpush2.bf16.msra.mxu0 0
    %343 = vmatprep.subr.bf16.mxu0 0
    %344 = vmatpush2.bf16.msra.mxu0 0
    %345 = vmatprep.subr.bf16.mxu0 0
    %346 = vmatpush2.bf16.msra.mxu0 0
    %347 = vmatprep.subr.bf16.mxu0 0
    %348 = vmatpush2.bf16.msra.mxu0 0
    %349 = vmatprep.subr.bf16.mxu0 0
    %350 = vmatpush2.bf16.msra.mxu0 0
    %351 = vmatprep.subr.bf16.mxu0 0
    %352 = vmatpush2.bf16.msra.mxu0 0
    %353 = vmatprep.mubr.bf16.mxu0 0
    %354 = vmatmul.mubr.bf16.gmra.mxu0 %v185
    %v355 = vpop.f32.mrf.mxu0
    %v356 = vadd.f32 0.0, %v355
    %v357 = vpop.f32.mrf.mxu0
    %v358 = vadd.f32 0.0, %v357
    %v359 = vpop.f32.mrf.mxu0
    %v360 = vadd.f32 0.0, %v359
    %v361 = vpop.f32.mrf.mxu0
    %v362 = vadd.f32 0.0, %v361
    %363 = vmatprep.mubr.bf16.mxu0 0
    %364 = vmatmul.mubr.bf16.gmra.mxu0 %v188
    %v365 = vpop.f32.mrf.mxu0
    %v366 = vadd.f32 0.0, %v365
    %v367 = vpop.f32.mrf.mxu0
    %v368 = vadd.f32 0.0, %v367
    %v369 = vpop.f32.mrf.mxu0
    %v370 = vadd.f32 0.0, %v369
    %v371 = vpop.f32.mrf.mxu0
    %v372 = vadd.f32 0.0, %v371
    %373 = vdwg.mxu0
    %374 = vmatprep.subr.bf16.mxu0 0
    %375 = vmatpush1.bf16.msra.mxu0 0
    %376 = vmatprep.subr.bf16.mxu0 0
    %377 = vmatpush1.bf16.msra.mxu0 0
    %378 = vmatprep.subr.bf16.mxu0 0
    %379 = vmatpush1.bf16.msra.mxu0 0
    %380 = vmatprep.subr.bf16.mxu0 0
    %381 = vmatpush1.bf16.msra.mxu0 0
    %382 = vmatprep.subr.bf16.mxu0 0
    %383 = vmatpush1.bf16.msra.mxu0 0
    %384 = vmatprep.subr.bf16.mxu0 %v213
    %385 = vmatpush1.bf16.msra.mxu0 %v210
    %386 = vmatprep.subr.bf16.mxu0 %v158
    %387 = vmatpush1.bf16.msra.mxu0 %v157
    %388 = vmatprep.subr.bf16.mxu0 %v150
    %389 = vmatpush1.bf16.msra.mxu0 %v149
    %390 = vmatprep.subr.bf16.mxu0 0
    %391 = vmatpush2.bf16.msra.mxu0 0
    %392 = vmatprep.subr.bf16.mxu0 0
    %393 = vmatpush2.bf16.msra.mxu0 0
    %394 = vmatprep.subr.bf16.mxu0 0
    %395 = vmatpush2.bf16.msra.mxu0 0
    %396 = vmatprep.subr.bf16.mxu0 0
    %397 = vmatpush2.bf16.msra.mxu0 0
    %398 = vmatprep.subr.bf16.mxu0 0
    %399 = vmatpush2.bf16.msra.mxu0 0
    %400 = vmatprep.subr.bf16.mxu0 0
    %401 = vmatpush2.bf16.msra.mxu0 0
    %402 = vmatprep.subr.bf16.mxu0 0
    %403 = vmatpush2.bf16.msra.mxu0 0
    %404 = vmatprep.subr.bf16.mxu0 0
    %405 = vmatpush2.bf16.msra.mxu0 0
    %406 = vmatprep.mubr.bf16.mxu0 0
    %407 = vmatmul.mubr.bf16.gmra.mxu0 %v185
    %v408 = vpop.f32.mrf.mxu0
    %v409 = vadd.f32 0.0, %v408
    %v410 = vpop.f32.mrf.mxu0
    %v411 = vadd.f32 0.0, %v410
    %v412 = vpop.f32.mrf.mxu0
    %v413 = vadd.f32 0.0, %v412
    %v414 = vpop.f32.mrf.mxu0
    %v415 = vadd.f32 0.0, %v414
    %416 = vmatprep.mubr.bf16.mxu0 0
    %417 = vmatmul.mubr.bf16.gmra.mxu0 %v188
    %v418 = vpop.f32.mrf.mxu0
    %v419 = vadd.f32 0.0, %v418
    %v420 = vpop.f32.mrf.mxu0
    %v421 = vadd.f32 0.0, %v420
    %v422 = vpop.f32.mrf.mxu0
    %v423 = vadd.f32 0.0, %v422
    %v424 = vpop.f32.mrf.mxu0
    %v425 = vadd.f32 0.0, %v424
    %426 = vdwg.mxu0
    %v427 = vadd.f32 %v250, %v252
    %v428 = vadd.f32 %v427, %v303
    %v429 = vadd.f32 %v428, %v305
    %v430 = vadd.f32 %v429, %v356
    %v431 = vadd.f32 %v430, %v358
    %v432 = vadd.f32 %v431, %v409
    %v433 = vadd.f32 %v432, %v411
    %434 = vadd.xlane.f32.xlu0 %v433
    %v435 = vpop.xlane.xlu0 %434
    %v436 = vadd.f32 %v254, %v256
    %v437 = vadd.f32 %v436, %v307
    %v438 = vadd.f32 %v437, %v309
    %v439 = vadd.f32 %v438, %v360
    %v440 = vadd.f32 %v439, %v362
    %v441 = vadd.f32 %v440, %v413
    %v442 = vadd.f32 %v441, %v415
    %443 = vadd.xlane.f32.xlu0 %v442
    %v444 = vpop.xlane.xlu0 %443
    %v445 = vadd.f32 %v260, %v262
    %v446 = vadd.f32 %v445, %v313
    %v447 = vadd.f32 %v446, %v315
    %v448 = vadd.f32 %v447, %v366
    %v449 = vadd.f32 %v448, %v368
    %v450 = vadd.f32 %v449, %v419
    %v451 = vadd.f32 %v450, %v421
    %452 = vadd.xlane.f32.xlu0 %v451
    %v453 = vpop.xlane.xlu0 %452
    %v454 = vadd.f32 %v264, %v266
    %v455 = vadd.f32 %v454, %v317
    %v456 = vadd.f32 %v455, %v319
    %v457 = vadd.f32 %v456, %v370
    %v458 = vadd.f32 %v457, %v372
    %v459 = vadd.f32 %v458, %v423
    %v460 = vadd.f32 %v459, %v425
    %461 = vadd.xlane.f32.xlu0 %v460
    %v462 = vpop.xlane.xlu0 %461
    %v463 = vrcp.pop 1024.0
    %v464 = vmul.f32 %v435, %v463
    %v465 = vmul.f32 %v444, %v463
    %v466 = vmul.f32 %v453, %v463
    %v467 = vmul.f32 %v462, %v463
    %v468 = vsub.f32 %v250, %v464
    %v469 = vsub.f32 %v252, %v464
    %v470 = vsub.f32 %v303, %v464
    %v471 = vsub.f32 %v305, %v464
    %v472 = vsub.f32 %v356, %v464
    %v473 = vsub.f32 %v358, %v464
    %v474 = vsub.f32 %v409, %v464
    %v475 = vsub.f32 %v411, %v464
    %v476 = vsub.f32 %v254, %v465
    %v477 = vsub.f32 %v256, %v465
    %v478 = vsub.f32 %v307, %v465
    %v479 = vsub.f32 %v309, %v465
    %v480 = vsub.f32 %v360, %v465
    %v481 = vsub.f32 %v362, %v465
    %v482 = vsub.f32 %v413, %v465
    %v483 = vsub.f32 %v415, %v465
    %v484 = vsub.f32 %v260, %v466
    %v485 = vsub.f32 %v262, %v466
    %v486 = vsub.f32 %v313, %v466
    %v487 = vsub.f32 %v315, %v466
    %v488 = vsub.f32 %v366, %v466
    %v489 = vsub.f32 %v368, %v466
    %v490 = vsub.f32 %v419, %v466
    %v491 = vsub.f32 %v421, %v466
    %v492 = vsub.f32 %v264, %v467
    %v493 = vsub.f32 %v266, %v467
    %v494 = vsub.f32 %v317, %v467
    %v495 = vsub.f32 %v319, %v467
    %v496 = vsub.f32 %v370, %v467
    %v497 = vsub.f32 %v372, %v467
    %v498 = vsub.f32 %v423, %v467
    %v499 = vsub.f32 %v425, %v467
    %v500 = vmul.f32 %v468, %v468
    %v501 = vmul.f32 %v469, %v469
    %v502 = vmul.f32 %v470, %v470
    %v503 = vmul.f32 %v471, %v471
    %v504 = vmul.f32 %v472, %v472
    %v505 = vmul.f32 %v473, %v473
    %v506 = vmul.f32 %v474, %v474
    %v507 = vmul.f32 %v475, %v475
    %v508 = vmul.f32 %v476, %v476
    %v509 = vmul.f32 %v477, %v477
    %v510 = vmul.f32 %v478, %v478
    %v511 = vmul.f32 %v479, %v479
    %v512 = vmul.f32 %v480, %v480
    %v513 = vmul.f32 %v481, %v481
    %v514 = vmul.f32 %v482, %v482
    %v515 = vmul.f32 %v483, %v483
    %v516 = vmul.f32 %v484, %v484
    %v517 = vmul.f32 %v485, %v485
    %v518 = vmul.f32 %v486, %v486
    %v519 = vmul.f32 %v487, %v487
    %v520 = vmul.f32 %v488, %v488
    %v521 = vmul.f32 %v489, %v489
    %v522 = vmul.f32 %v490, %v490
    %v523 = vmul.f32 %v491, %v491
    %v524 = vmul.f32 %v492, %v492
    %v525 = vmul.f32 %v493, %v493
    %v526 = vmul.f32 %v494, %v494
    %v527 = vmul.f32 %v495, %v495
    %v528 = vmul.f32 %v496, %v496
    %v529 = vmul.f32 %v497, %v497
    %v530 = vmul.f32 %v498, %v498
    %v531 = vmul.f32 %v499, %v499
    %v532 = vadd.f32 %v500, %v501
    %v533 = vadd.f32 %v532, %v502
    %v534 = vadd.f32 %v533, %v503
    %v535 = vadd.f32 %v534, %v504
    %v536 = vadd.f32 %v535, %v505
    %v537 = vadd.f32 %v536, %v506
    %v538 = vadd.f32 %v537, %v507
    %539 = vadd.xlane.f32.xlu0 %v538
    %v540 = vpop.xlane.xlu0 %539
    %v541 = vadd.f32 %v508, %v509
    %v542 = vadd.f32 %v541, %v510
    %v543 = vadd.f32 %v542, %v511
    %v544 = vadd.f32 %v543, %v512
    %v545 = vadd.f32 %v544, %v513
    %v546 = vadd.f32 %v545, %v514
    %v547 = vadd.f32 %v546, %v515
    %548 = vadd.xlane.f32.xlu0 %v547
    %v549 = vpop.xlane.xlu0 %548
    %v550 = vadd.f32 %v516, %v517
    %v551 = vadd.f32 %v550, %v518
    %v552 = vadd.f32 %v551, %v519
    %v553 = vadd.f32 %v552, %v520
    %v554 = vadd.f32 %v553, %v521
    %v555 = vadd.f32 %v554, %v522
    %v556 = vadd.f32 %v555, %v523
    %557 = vadd.xlane.f32.xlu0 %v556
    %v558 = vpop.xlane.xlu0 %557
    %v559 = vadd.f32 %v524, %v525
    %v560 = vadd.f32 %v559, %v526
    %v561 = vadd.f32 %v560, %v527
    %v562 = vadd.f32 %v561, %v528
    %v563 = vadd.f32 %v562, %v529
    %v564 = vadd.f32 %v563, %v530
    %v565 = vadd.f32 %v564, %v531
    %566 = vadd.xlane.f32.xlu0 %v565
    %v567 = vpop.xlane.xlu0 %566
    %v568 = vmul.f32 %v540, %v463
    %v569 = vmul.f32 %v549, %v463
    %v570 = vmul.f32 %v558, %v463
    %v571 = vmul.f32 %v567, %v463
    %v572 = vadd.f32 %v568, 0.001
    %v573 = vadd.f32 %v569, 0.001
    %v574 = vadd.f32 %v570, 0.001
    %v575 = vadd.f32 %v571, 0.001
    %v576 = vrsqrt.pop %v572
    %v577 = vrsqrt.pop %v573
    %v578 = vrsqrt.pop %v574
    %v579 = vrsqrt.pop %v575
    %v580 = vmul.f32 %v468, %v576
    %v581 = vmul.f32 %v469, %v576
    %v582 = vmul.f32 %v470, %v576
    %v583 = vmul.f32 %v471, %v576
    %v584 = vmul.f32 %v472, %v576
    %v585 = vmul.f32 %v473, %v576
    %v586 = vmul.f32 %v474, %v576
    %v587 = vmul.f32 %v475, %v576
    %v588 = vmul.f32 %v476, %v577
    %v589 = vmul.f32 %v477, %v577
    %v590 = vmul.f32 %v478, %v577
    %v591 = vmul.f32 %v479, %v577
    %v592 = vmul.f32 %v480, %v577
    %v593 = vmul.f32 %v481, %v577
    %v594 = vmul.f32 %v482, %v577
    %v595 = vmul.f32 %v483, %v577
    %v596 = vmul.f32 %v484, %v578
    %v597 = vmul.f32 %v485, %v578
    %v598 = vmul.f32 %v486, %v578
    %v599 = vmul.f32 %v487, %v578
    %v600 = vmul.f32 %v488, %v578
    %v601 = vmul.f32 %v489, %v578
    %v602 = vmul.f32 %v490, %v578
    %v603 = vmul.f32 %v491, %v578
    %v604 = vmul.f32 %v492, %v579
    %v605 = vmul.f32 %v493, %v579
    %v606 = vmul.f32 %v494, %v579
    %v607 = vmul.f32 %v495, %v579
    %v608 = vmul.f32 %v496, %v579
    %v609 = vmul.f32 %v497, %v579
    %v610 = vmul.f32 %v498, %v579
    %v611 = vmul.f32 %v499, %v579
    %v612 = vld [vmem:[%s3] sm:$0xff]
    %v613 = vld [vmem:[%s3 + $0x8] sm:$0xff]
    %v614 = vld [vmem:[%s3 + $0x10] sm:$0xff]
    %v615 = vld [vmem:[%s3 + $0x18] sm:$0xff]
    %617 = vset.pattern.permute.xlu0 0
    %618 = vperm.xlu0 %617, %v612
    %v619 = vpop.permute.xlu0 %618
    %622 = vset.pattern.permute.xlu0 0
    %623 = vperm.xlu0 %622, %v613
    %v624 = vpop.permute.xlu0 %623
    %627 = vset.pattern.permute.xlu0 0
    %628 = vperm.xlu0 %627, %v614
    %v629 = vpop.permute.xlu0 %628
    %632 = vset.pattern.permute.xlu0 0
    %633 = vperm.xlu0 %632, %v615
    %v634 = vpop.permute.xlu0 %633
    %v636 = vmul.f32 %v580, %v619
    %v637 = vmul.f32 %v581, %v619
    %v638 = vmul.f32 %v582, %v619
    %v639 = vmul.f32 %v583, %v619
    %v640 = vmul.f32 %v584, %v619
    %v641 = vmul.f32 %v585, %v619
    %v642 = vmul.f32 %v586, %v619
    %v643 = vmul.f32 %v587, %v619
    %v644 = vmul.f32 %v588, %v624
    %v645 = vmul.f32 %v589, %v624
    %v646 = vmul.f32 %v590, %v624
    %v647 = vmul.f32 %v591, %v624
    %v648 = vmul.f32 %v592, %v624
    %v649 = vmul.f32 %v593, %v624
    %v650 = vmul.f32 %v594, %v624
    %v651 = vmul.f32 %v595, %v624
    %v652 = vmul.f32 %v596, %v629
    %v653 = vmul.f32 %v597, %v629
    %v654 = vmul.f32 %v598, %v629
    %v655 = vmul.f32 %v599, %v629
    %v656 = vmul.f32 %v600, %v629
    %v657 = vmul.f32 %v601, %v629
    %v658 = vmul.f32 %v602, %v629
    %v659 = vmul.f32 %v603, %v629
    %v660 = vmul.f32 %v604, %v634
    %v661 = vmul.f32 %v605, %v634
    %v662 = vmul.f32 %v606, %v634
    %v663 = vmul.f32 %v607, %v634
    %v664 = vmul.f32 %v608, %v634
    %v665 = vmul.f32 %v609, %v634
    %v666 = vmul.f32 %v610, %v634
    %v667 = vmul.f32 %v611, %v634
    %v668 = vld [vmem:[%s4] sm:$0xff]
    %v669 = vld [vmem:[%s4 + $0x8] sm:$0xff]
    %v670 = vld [vmem:[%s4 + $0x10] sm:$0xff]
    %v671 = vld [vmem:[%s4 + $0x18] sm:$0xff]
    %673 = vset.pattern.permute.xlu0 0
    %674 = vperm.xlu0 %673, %v668
    %v675 = vpop.permute.xlu0 %674
    %678 = vset.pattern.permute.xlu0 0
    %679 = vperm.xlu0 %678, %v669
    %v680 = vpop.permute.xlu0 %679
    %683 = vset.pattern.permute.xlu0 0
    %684 = vperm.xlu0 %683, %v670
    %v685 = vpop.permute.xlu0 %684
    %688 = vset.pattern.permute.xlu0 0
    %689 = vperm.xlu0 %688, %v671
    %v690 = vpop.permute.xlu0 %689
    %v692 = vadd.f32 %v636, %v675
    %v693 = vadd.f32 %v637, %v675
    %v694 = vadd.f32 %v638, %v675
    %v695 = vadd.f32 %v639, %v675
    %v696 = vadd.f32 %v640, %v675
    %v697 = vadd.f32 %v641, %v675
    %v698 = vadd.f32 %v642, %v675
    %v699 = vadd.f32 %v643, %v675
    %v700 = vadd.f32 %v644, %v680
    %v701 = vadd.f32 %v645, %v680
    %v702 = vadd.f32 %v646, %v680
    %v703 = vadd.f32 %v647, %v680
    %v704 = vadd.f32 %v648, %v680
    %v705 = vadd.f32 %v649, %v680
    %v706 = vadd.f32 %v650, %v680
    %v707 = vadd.f32 %v651, %v680
    %v708 = vadd.f32 %v652, %v685
    %v709 = vadd.f32 %v653, %v685
    %v710 = vadd.f32 %v654, %v685
    %v711 = vadd.f32 %v655, %v685
    %v712 = vadd.f32 %v656, %v685
    %v713 = vadd.f32 %v657, %v685
    %v714 = vadd.f32 %v658, %v685
    %v715 = vadd.f32 %v659, %v685
    %v716 = vadd.f32 %v660, %v690
    %v717 = vadd.f32 %v661, %v690
    %v718 = vadd.f32 %v662, %v690
    %v719 = vadd.f32 %v663, %v690
    %v720 = vadd.f32 %v664, %v690
    %v721 = vadd.f32 %v665, %v690
    %v722 = vadd.f32 %v666, %v690
    %v723 = vadd.f32 %v667, %v690
    %v724 = vxor.u32 %v692, 2147483648
    %v725 = vxor.u32 %v693, 2147483648
    %v726 = vxor.u32 %v694, 2147483648
    %v727 = vxor.u32 %v695, 2147483648
    %v728 = vxor.u32 %v696, 2147483648
    %v729 = vxor.u32 %v697, 2147483648
    %v730 = vxor.u32 %v698, 2147483648
    %v731 = vxor.u32 %v699, 2147483648
    %v732 = vxor.u32 %v700, 2147483648
    %v733 = vxor.u32 %v701, 2147483648
    %v734 = vxor.u32 %v702, 2147483648
    %v735 = vxor.u32 %v703, 2147483648
    %v736 = vxor.u32 %v704, 2147483648
    %v737 = vxor.u32 %v705, 2147483648
    %v738 = vxor.u32 %v706, 2147483648
    %v739 = vxor.u32 %v707, 2147483648
    %v740 = vxor.u32 %v708, 2147483648
    %v741 = vxor.u32 %v709, 2147483648
    %v742 = vxor.u32 %v710, 2147483648
    %v743 = vxor.u32 %v711, 2147483648
    %v744 = vxor.u32 %v712, 2147483648
    %v745 = vxor.u32 %v713, 2147483648
    %v746 = vxor.u32 %v714, 2147483648
    %v747 = vxor.u32 %v715, 2147483648
    %v748 = vxor.u32 %v716, 2147483648
    %v749 = vxor.u32 %v717, 2147483648
    %v750 = vxor.u32 %v718, 2147483648
    %v751 = vxor.u32 %v719, 2147483648
    %v752 = vxor.u32 %v720, 2147483648
    %v753 = vxor.u32 %v721, 2147483648
    %v754 = vxor.u32 %v722, 2147483648
    %v755 = vxor.u32 %v723, 2147483648
    %v756 = vmul.f32 %v724, 1.442695
    %v757 = vpow.pop %v756
    %v758 = vmul.f32 %v725, 1.442695
    %v759 = vpow.pop %v758
    %v760 = vmul.f32 %v726, 1.442695
    %v761 = vpow.pop %v760
    %v762 = vmul.f32 %v727, 1.442695
    %v763 = vpow.pop %v762
    %v764 = vmul.f32 %v728, 1.442695
    %v765 = vpow.pop %v764
    %v766 = vmul.f32 %v729, 1.442695
    %v767 = vpow.pop %v766
    %v768 = vmul.f32 %v730, 1.442695
    %v769 = vpow.pop %v768
    %v770 = vmul.f32 %v731, 1.442695
    %v771 = vpow.pop %v770
    %v772 = vmul.f32 %v732, 1.442695
    %v773 = vpow.pop %v772
    %v774 = vmul.f32 %v733, 1.442695
    %v775 = vpow.pop %v774
    %v776 = vmul.f32 %v734, 1.442695
    %v777 = vpow.pop %v776
    %v778 = vmul.f32 %v735, 1.442695
    %v779 = vpow.pop %v778
    %v780 = vmul.f32 %v736, 1.442695
    %v781 = vpow.pop %v780
    %v782 = vmul.f32 %v737, 1.442695
    %v783 = vpow.pop %v782
    %v784 = vmul.f32 %v738, 1.442695
    %v785 = vpow.pop %v784
    %v786 = vmul.f32 %v739, 1.442695
    %v787 = vpow.pop %v786
    %v788 = vmul.f32 %v740, 1.442695
    %v789 = vpow.pop %v788
    %v790 = vmul.f32 %v741, 1.442695
    %v791 = vpow.pop %v790
    %v792 = vmul.f32 %v742, 1.442695
    %v793 = vpow.pop %v792
    %v794 = vmul.f32 %v743, 1.442695
    %v795 = vpow.pop %v794
    %v796 = vmul.f32 %v744, 1.442695
    %v797 = vpow.pop %v796
    %v798 = vmul.f32 %v745, 1.442695
    %v799 = vpow.pop %v798
    %v800 = vmul.f32 %v746, 1.442695
    %v801 = vpow.pop %v800
    %v802 = vmul.f32 %v747, 1.442695
    %v803 = vpow.pop %v802
    %v804 = vmul.f32 %v748, 1.442695
    %v805 = vpow.pop %v804
    %v806 = vmul.f32 %v749, 1.442695
    %v807 = vpow.pop %v806
    %v808 = vmul.f32 %v750, 1.442695
    %v809 = vpow.pop %v808
    %v810 = vmul.f32 %v751, 1.442695
    %v811 = vpow.pop %v810
    %v812 = vmul.f32 %v752, 1.442695
    %v813 = vpow.pop %v812
    %v814 = vmul.f32 %v753, 1.442695
    %v815 = vpow.pop %v814
    %v816 = vmul.f32 %v754, 1.442695
    %v817 = vpow.pop %v816
    %v818 = vmul.f32 %v755, 1.442695
    %v819 = vpow.pop %v818
    %v820 = vadd.f32 %v757, 1.0
    %v821 = vadd.f32 %v759, 1.0
    %v822 = vadd.f32 %v761, 1.0
    %v823 = vadd.f32 %v763, 1.0
    %v824 = vadd.f32 %v765, 1.0
    %v825 = vadd.f32 %v767, 1.0
    %v826 = vadd.f32 %v769, 1.0
    %v827 = vadd.f32 %v771, 1.0
    %v828 = vadd.f32 %v773, 1.0
    %v829 = vadd.f32 %v775, 1.0
    %v830 = vadd.f32 %v777, 1.0
    %v831 = vadd.f32 %v779, 1.0
    %v832 = vadd.f32 %v781, 1.0
    %v833 = vadd.f32 %v783, 1.0
    %v834 = vadd.f32 %v785, 1.0
    %v835 = vadd.f32 %v787, 1.0
    %v836 = vadd.f32 %v789, 1.0
    %v837 = vadd.f32 %v791, 1.0
    %v838 = vadd.f32 %v793, 1.0
    %v839 = vadd.f32 %v795, 1.0
    %v840 = vadd.f32 %v797, 1.0
    %v841 = vadd.f32 %v799, 1.0
    %v842 = vadd.f32 %v801, 1.0
    %v843 = vadd.f32 %v803, 1.0
    %v844 = vadd.f32 %v805, 1.0
    %v845 = vadd.f32 %v807, 1.0
    %v846 = vadd.f32 %v809, 1.0
    %v847 = vadd.f32 %v811, 1.0
    %v848 = vadd.f32 %v813, 1.0
    %v849 = vadd.f32 %v815, 1.0
    %v850 = vadd.f32 %v817, 1.0
    %v851 = vadd.f32 %v819, 1.0
    %v852 = vrcp.pop %v820
    %v853 = vmul.f32 1.0, %v852
    %v854 = vrcp.pop %v821
    %v855 = vmul.f32 1.0, %v854
    %v856 = vrcp.pop %v822
    %v857 = vmul.f32 1.0, %v856
    %v858 = vrcp.pop %v823
    %v859 = vmul.f32 1.0, %v858
    %v860 = vrcp.pop %v824
    %v861 = vmul.f32 1.0, %v860
    %v862 = vrcp.pop %v825
    %v863 = vmul.f32 1.0, %v862
    %v864 = vrcp.pop %v826
    %v865 = vmul.f32 1.0, %v864
    %v866 = vrcp.pop %v827
    %v867 = vmul.f32 1.0, %v866
    %v868 = vrcp.pop %v828
    %v869 = vmul.f32 1.0, %v868
    %v870 = vrcp.pop %v829
    %v871 = vmul.f32 1.0, %v870
    %v872 = vrcp.pop %v830
    %v873 = vmul.f32 1.0, %v872
    %v874 = vrcp.pop %v831
    %v875 = vmul.f32 1.0, %v874
    %v876 = vrcp.pop %v832
    %v877 = vmul.f32 1.0, %v876
    %v878 = vrcp.pop %v833
    %v879 = vmul.f32 1.0, %v878
    %v880 = vrcp.pop %v834
    %v881 = vmul.f32 1.0, %v880
    %v882 = vrcp.pop %v835
    %v883 = vmul.f32 1.0, %v882
    %v884 = vrcp.pop %v836
    %v885 = vmul.f32 1.0, %v884
    %v886 = vrcp.pop %v837
    %v887 = vmul.f32 1.0, %v886
    %v888 = vrcp.pop %v838
    %v889 = vmul.f32 1.0, %v888
    %v890 = vrcp.pop %v839
    %v891 = vmul.f32 1.0, %v890
    %v892 = vrcp.pop %v840
    %v893 = vmul.f32 1.0, %v892
    %v894 = vrcp.pop %v841
    %v895 = vmul.f32 1.0, %v894
    %v896 = vrcp.pop %v842
    %v897 = vmul.f32 1.0, %v896
    %v898 = vrcp.pop %v843
    %v899 = vmul.f32 1.0, %v898
    %v900 = vrcp.pop %v844
    %v901 = vmul.f32 1.0, %v900
    %v902 = vrcp.pop %v845
    %v903 = vmul.f32 1.0, %v902
    %v904 = vrcp.pop %v846
    %v905 = vmul.f32 1.0, %v904
    %v906 = vrcp.pop %v847
    %v907 = vmul.f32 1.0, %v906
    %v908 = vrcp.pop %v848
    %v909 = vmul.f32 1.0, %v908
    %v910 = vrcp.pop %v849
    %v911 = vmul.f32 1.0, %v910
    %v912 = vrcp.pop %v850
    %v913 = vmul.f32 1.0, %v912
    %v914 = vrcp.pop %v851
    %v915 = vmul.f32 1.0, %v914
    %v916 = vmul.f32 %v692, %v853
    %v917 = vmul.f32 %v693, %v855
    %v918 = vmul.f32 %v694, %v857
    %v919 = vmul.f32 %v695, %v859
    %v920 = vmul.f32 %v696, %v861
    %v921 = vmul.f32 %v697, %v863
    %v922 = vmul.f32 %v698, %v865
    %v923 = vmul.f32 %v699, %v867
    %v924 = vmul.f32 %v700, %v869
    %v925 = vmul.f32 %v701, %v871
    %v926 = vmul.f32 %v702, %v873
    %v927 = vmul.f32 %v703, %v875
    %v928 = vmul.f32 %v704, %v877
    %v929 = vmul.f32 %v705, %v879
    %v930 = vmul.f32 %v706, %v881
    %v931 = vmul.f32 %v707, %v883
    %v932 = vmul.f32 %v708, %v885
    %v933 = vmul.f32 %v709, %v887
    %v934 = vmul.f32 %v710, %v889
    %v935 = vmul.f32 %v711, %v891
    %v936 = vmul.f32 %v712, %v893
    %v937 = vmul.f32 %v713, %v895
    %v938 = vmul.f32 %v714, %v897
    %v939 = vmul.f32 %v715, %v899
    %v940 = vmul.f32 %v716, %v901
    %v941 = vmul.f32 %v717, %v903
    %v942 = vmul.f32 %v718, %v905
    %v943 = vmul.f32 %v719, %v907
    %v944 = vmul.f32 %v720, %v909
    %v945 = vmul.f32 %v721, %v911
    %v946 = vmul.f32 %v722, %v913
    %v947 = vmul.f32 %v723, %v915
    %v948 = vmul.f32 %v916, %v916
    %v949 = vmul.f32 %v917, %v917
    %v950 = vmul.f32 %v924, %v924
    %v951 = vmul.f32 %v925, %v925
    %v952 = vmul.f32 %v932, %v932
    %v953 = vmul.f32 %v933, %v933
    %v954 = vmul.f32 %v940, %v940
    %v955 = vmul.f32 %v941, %v941
    %v956 = vadd.f32 %v948, %v949
    %957 = vadd.xlane.f32.xlu0 %v956
    %v958 = vpop.xlane.xlu0 %957
    %v959 = vadd.f32 %v950, %v951
    %960 = vadd.xlane.f32.xlu0 %v959
    %v961 = vpop.xlane.xlu0 %960
    %v962 = vadd.f32 %v952, %v953
    %963 = vadd.xlane.f32.xlu0 %v962
    %v964 = vpop.xlane.xlu0 %963
    %v965 = vadd.f32 %v954, %v955
    %966 = vadd.xlane.f32.xlu0 %v965
    %v967 = vpop.xlane.xlu0 %966
    %v968 = vadd.f32 %v958, %v961
    %v969 = vadd.f32 %v968, %v964
    %v970 = vadd.f32 %v969, %v967
    %v971 = vrot.slane %v970, 4
    %v972 = vadd.f32 %v970, %v971
    %v973 = vrot.slane %v972, 2
    %v974 = vadd.f32 %v972, %v973
    %v975 = vrot.slane %v974, 1
    %v976 = vadd.f32 %v974, %v975
    %v977 = vrcp.pop 0.1
    %v978 = vmul.f32 %v976, %v977
    %v979 = vmul.f32 %v916, %v918
    %v980 = vmul.f32 %v917, %v919
    %v981 = vmul.f32 %v924, %v926
    %v982 = vmul.f32 %v925, %v927
    %v983 = vmul.f32 %v932, %v934
    %v984 = vmul.f32 %v933, %v935
    %v985 = vmul.f32 %v940, %v942
    %v986 = vmul.f32 %v941, %v943
    %v987 = vadd.f32 %v979, %v980
    %988 = vadd.xlane.f32.xlu0 %v987
    %v989 = vpop.xlane.xlu0 %988
    %v990 = vadd.f32 %v981, %v982
    %991 = vadd.xlane.f32.xlu0 %v990
    %v992 = vpop.xlane.xlu0 %991
    %v993 = vadd.f32 %v983, %v984
    %994 = vadd.xlane.f32.xlu0 %v993
    %v995 = vpop.xlane.xlu0 %994
    %v996 = vadd.f32 %v985, %v986
    %997 = vadd.xlane.f32.xlu0 %v996
    %v998 = vpop.xlane.xlu0 %997
    %v999 = vadd.f32 %v989, %v992
    %v1000 = vadd.f32 %v999, %v995
    %v1001 = vadd.f32 %v1000, %v998
    %v1002 = vrot.slane %v1001, 4
    %v1003 = vadd.f32 %v1001, %v1002
    %v1004 = vrot.slane %v1003, 2
    %v1005 = vadd.f32 %v1003, %v1004
    %v1006 = vrot.slane %v1005, 1
    %v1007 = vadd.f32 %v1005, %v1006
    %v1008 = vmul.f32 %v1007, %v977
    %v1009 = vmul.f32 %v916, %v920
    %v1010 = vmul.f32 %v917, %v921
    %v1011 = vmul.f32 %v924, %v928
    %v1012 = vmul.f32 %v925, %v929
    %v1013 = vmul.f32 %v932, %v936
    %v1014 = vmul.f32 %v933, %v937
    %v1015 = vmul.f32 %v940, %v944
    %v1016 = vmul.f32 %v941, %v945
    %v1017 = vadd.f32 %v1009, %v1010
    %1018 = vadd.xlane.f32.xlu0 %v1017
    %v1019 = vpop.xlane.xlu0 %1018
    %v1020 = vadd.f32 %v1011, %v1012
    %1021 = vadd.xlane.f32.xlu0 %v1020
    %v1022 = vpop.xlane.xlu0 %1021
    %v1023 = vadd.f32 %v1013, %v1014
    %1024 = vadd.xlane.f32.xlu0 %v1023
    %v1025 = vpop.xlane.xlu0 %1024
    %v1026 = vadd.f32 %v1015, %v1016
    %1027 = vadd.xlane.f32.xlu0 %v1026
    %v1028 = vpop.xlane.xlu0 %1027
    %v1029 = vadd.f32 %v1019, %v1022
    %v1030 = vadd.f32 %v1029, %v1025
    %v1031 = vadd.f32 %v1030, %v1028
    %v1032 = vrot.slane %v1031, 4
    %v1033 = vadd.f32 %v1031, %v1032
    %v1034 = vrot.slane %v1033, 2
    %v1035 = vadd.f32 %v1033, %v1034
    %v1036 = vrot.slane %v1035, 1
    %v1037 = vadd.f32 %v1035, %v1036
    %v1038 = vmul.f32 %v1037, %v977
    %v1039 = vmul.f32 %v916, %v922
    %v1040 = vmul.f32 %v917, %v923
    %v1041 = vmul.f32 %v924, %v930
    %v1042 = vmul.f32 %v925, %v931
    %v1043 = vmul.f32 %v932, %v938
    %v1044 = vmul.f32 %v933, %v939
    %v1045 = vmul.f32 %v940, %v946
    %v1046 = vmul.f32 %v941, %v947
    %v1047 = vadd.f32 %v1039, %v1040
    %1048 = vadd.xlane.f32.xlu0 %v1047
    %v1049 = vpop.xlane.xlu0 %1048
    %v1050 = vadd.f32 %v1041, %v1042
    %1051 = vadd.xlane.f32.xlu0 %v1050
    %v1052 = vpop.xlane.xlu0 %1051
    %v1053 = vadd.f32 %v1043, %v1044
    %1054 = vadd.xlane.f32.xlu0 %v1053
    %v1055 = vpop.xlane.xlu0 %1054
    %v1056 = vadd.f32 %v1045, %v1046
    %1057 = vadd.xlane.f32.xlu0 %v1056
    %v1058 = vpop.xlane.xlu0 %1057
    %v1059 = vadd.f32 %v1049, %v1052
    %v1060 = vadd.f32 %v1059, %v1055
    %v1061 = vadd.f32 %v1060, %v1058
    %v1062 = vrot.slane %v1061, 4
    %v1063 = vadd.f32 %v1061, %v1062
    %v1064 = vrot.slane %v1063, 2
    %v1065 = vadd.f32 %v1063, %v1064
    %v1066 = vrot.slane %v1065, 1
    %v1067 = vadd.f32 %v1065, %v1066
    %v1068 = vmul.f32 %v1067, %v977
    %v1069 = vmul.f32 %v918, %v918
    %v1070 = vmul.f32 %v919, %v919
    %v1071 = vmul.f32 %v926, %v926
    %v1072 = vmul.f32 %v927, %v927
    %v1073 = vmul.f32 %v934, %v934
    %v1074 = vmul.f32 %v935, %v935
    %v1075 = vmul.f32 %v942, %v942
    %v1076 = vmul.f32 %v943, %v943
    %v1077 = vadd.f32 %v1069, %v1070
    %1078 = vadd.xlane.f32.xlu0 %v1077
    %v1079 = vpop.xlane.xlu0 %1078
    %v1080 = vadd.f32 %v1071, %v1072
    %1081 = vadd.xlane.f32.xlu0 %v1080
    %v1082 = vpop.xlane.xlu0 %1081
    %v1083 = vadd.f32 %v1073, %v1074
    %1084 = vadd.xlane.f32.xlu0 %v1083
    %v1085 = vpop.xlane.xlu0 %1084
    %v1086 = vadd.f32 %v1075, %v1076
    %1087 = vadd.xlane.f32.xlu0 %v1086
    %v1088 = vpop.xlane.xlu0 %1087
    %v1089 = vadd.f32 %v1079, %v1082
    %v1090 = vadd.f32 %v1089, %v1085
    %v1091 = vadd.f32 %v1090, %v1088
    %v1092 = vrot.slane %v1091, 4
    %v1093 = vadd.f32 %v1091, %v1092
    %v1094 = vrot.slane %v1093, 2
    %v1095 = vadd.f32 %v1093, %v1094
    %v1096 = vrot.slane %v1095, 1
    %v1097 = vadd.f32 %v1095, %v1096
    %v1098 = vmul.f32 %v1097, %v977
    %v1099 = vmul.f32 %v918, %v920
    %v1100 = vmul.f32 %v919, %v921
    %v1101 = vmul.f32 %v926, %v928
    %v1102 = vmul.f32 %v927, %v929
    %v1103 = vmul.f32 %v934, %v936
    %v1104 = vmul.f32 %v935, %v937
    %v1105 = vmul.f32 %v942, %v944
    %v1106 = vmul.f32 %v943, %v945
    %v1107 = vadd.f32 %v1099, %v1100
    %1108 = vadd.xlane.f32.xlu0 %v1107
    %v1109 = vpop.xlane.xlu0 %1108
    %v1110 = vadd.f32 %v1101, %v1102
    %1111 = vadd.xlane.f32.xlu0 %v1110
    %v1112 = vpop.xlane.xlu0 %1111
    %v1113 = vadd.f32 %v1103, %v1104
    %1114 = vadd.xlane.f32.xlu0 %v1113
    %v1115 = vpop.xlane.xlu0 %1114
    %v1116 = vadd.f32 %v1105, %v1106
    %1117 = vadd.xlane.f32.xlu0 %v1116
    %v1118 = vpop.xlane.xlu0 %1117
    %v1119 = vadd.f32 %v1109, %v1112
    %v1120 = vadd.f32 %v1119, %v1115
    %v1121 = vadd.f32 %v1120, %v1118
    %v1122 = vrot.slane %v1121, 4
    %v1123 = vadd.f32 %v1121, %v1122
    %v1124 = vrot.slane %v1123, 2
    %v1125 = vadd.f32 %v1123, %v1124
    %v1126 = vrot.slane %v1125, 1
    %v1127 = vadd.f32 %v1125, %v1126
    %v1128 = vmul.f32 %v1127, %v977
    %v1129 = vmul.f32 %v918, %v922
    %v1130 = vmul.f32 %v919, %v923
    %v1131 = vmul.f32 %v926, %v930
    %v1132 = vmul.f32 %v927, %v931
    %v1133 = vmul.f32 %v934, %v938
    %v1134 = vmul.f32 %v935, %v939
    %v1135 = vmul.f32 %v942, %v946
    %v1136 = vmul.f32 %v943, %v947
    %v1137 = vadd.f32 %v1129, %v1130
    %1138 = vadd.xlane.f32.xlu0 %v1137
    %v1139 = vpop.xlane.xlu0 %1138
    %v1140 = vadd.f32 %v1131, %v1132
    %1141 = vadd.xlane.f32.xlu0 %v1140
    %v1142 = vpop.xlane.xlu0 %1141
    %v1143 = vadd.f32 %v1133, %v1134
    %1144 = vadd.xlane.f32.xlu0 %v1143
    %v1145 = vpop.xlane.xlu0 %1144
    %v1146 = vadd.f32 %v1135, %v1136
    %1147 = vadd.xlane.f32.xlu0 %v1146
    %v1148 = vpop.xlane.xlu0 %1147
    %v1149 = vadd.f32 %v1139, %v1142
    %v1150 = vadd.f32 %v1149, %v1145
    %v1151 = vadd.f32 %v1150, %v1148
    %v1152 = vrot.slane %v1151, 4
    %v1153 = vadd.f32 %v1151, %v1152
    %v1154 = vrot.slane %v1153, 2
    %v1155 = vadd.f32 %v1153, %v1154
    %v1156 = vrot.slane %v1155, 1
    %v1157 = vadd.f32 %v1155, %v1156
    %v1158 = vmul.f32 %v1157, %v977
    %v1159 = vmul.f32 %v920, %v920
    %v1160 = vmul.f32 %v921, %v921
    %v1161 = vmul.f32 %v928, %v928
    %v1162 = vmul.f32 %v929, %v929
    %v1163 = vmul.f32 %v936, %v936
    %v1164 = vmul.f32 %v937, %v937
    %v1165 = vmul.f32 %v944, %v944
    %v1166 = vmul.f32 %v945, %v945
    %v1167 = vadd.f32 %v1159, %v1160
    %1168 = vadd.xlane.f32.xlu0 %v1167
    %v1169 = vpop.xlane.xlu0 %1168
    %v1170 = vadd.f32 %v1161, %v1162
    %1171 = vadd.xlane.f32.xlu0 %v1170
    %v1172 = vpop.xlane.xlu0 %1171
    %v1173 = vadd.f32 %v1163, %v1164
    %1174 = vadd.xlane.f32.xlu0 %v1173
    %v1175 = vpop.xlane.xlu0 %1174
    %v1176 = vadd.f32 %v1165, %v1166
    %1177 = vadd.xlane.f32.xlu0 %v1176
    %v1178 = vpop.xlane.xlu0 %1177
    %v1179 = vadd.f32 %v1169, %v1172
    %v1180 = vadd.f32 %v1179, %v1175
    %v1181 = vadd.f32 %v1180, %v1178
    %v1182 = vrot.slane %v1181, 4
    %v1183 = vadd.f32 %v1181, %v1182
    %v1184 = vrot.slane %v1183, 2
    %v1185 = vadd.f32 %v1183, %v1184
    %v1186 = vrot.slane %v1185, 1
    %v1187 = vadd.f32 %v1185, %v1186
    %v1188 = vmul.f32 %v1187, %v977
    %v1189 = vmul.f32 %v920, %v922
    %v1190 = vmul.f32 %v921, %v923
    %v1191 = vmul.f32 %v928, %v930
    %v1192 = vmul.f32 %v929, %v931
    %v1193 = vmul.f32 %v936, %v938
    %v1194 = vmul.f32 %v937, %v939
    %v1195 = vmul.f32 %v944, %v946
    %v1196 = vmul.f32 %v945, %v947
    %v1197 = vadd.f32 %v1189, %v1190
    %1198 = vadd.xlane.f32.xlu0 %v1197
    %v1199 = vpop.xlane.xlu0 %1198
    %v1200 = vadd.f32 %v1191, %v1192
    %1201 = vadd.xlane.f32.xlu0 %v1200
    %v1202 = vpop.xlane.xlu0 %1201
    %v1203 = vadd.f32 %v1193, %v1194
    %1204 = vadd.xlane.f32.xlu0 %v1203
    %v1205 = vpop.xlane.xlu0 %1204
    %v1206 = vadd.f32 %v1195, %v1196
    %1207 = vadd.xlane.f32.xlu0 %v1206
    %v1208 = vpop.xlane.xlu0 %1207
    %v1209 = vadd.f32 %v1199, %v1202
    %v1210 = vadd.f32 %v1209, %v1205
    %v1211 = vadd.f32 %v1210, %v1208
    %v1212 = vrot.slane %v1211, 4
    %v1213 = vadd.f32 %v1211, %v1212
    %v1214 = vrot.slane %v1213, 2
    %v1215 = vadd.f32 %v1213, %v1214
    %v1216 = vrot.slane %v1215, 1
    %v1217 = vadd.f32 %v1215, %v1216
    %v1218 = vmul.f32 %v1217, %v977
    %v1219 = vmul.f32 %v922, %v922
    %v1220 = vmul.f32 %v923, %v923
    %v1221 = vmul.f32 %v930, %v930
    %v1222 = vmul.f32 %v931, %v931
    %v1223 = vmul.f32 %v938, %v938
    %v1224 = vmul.f32 %v939, %v939
    %v1225 = vmul.f32 %v946, %v946
    %v1226 = vmul.f32 %v947, %v947
    %v1227 = vadd.f32 %v1219, %v1220
    %1228 = vadd.xlane.f32.xlu0 %v1227
    %v1229 = vpop.xlane.xlu0 %1228
    %v1230 = vadd.f32 %v1221, %v1222
    %1231 = vadd.xlane.f32.xlu0 %v1230
    %v1232 = vpop.xlane.xlu0 %1231
    %v1233 = vadd.f32 %v1223, %v1224
    %1234 = vadd.xlane.f32.xlu0 %v1233
    %v1235 = vpop.xlane.xlu0 %1234
    %v1236 = vadd.f32 %v1225, %v1226
    %1237 = vadd.xlane.f32.xlu0 %v1236
    %v1238 = vpop.xlane.xlu0 %1237
    %v1239 = vadd.f32 %v1229, %v1232
    %v1240 = vadd.f32 %v1239, %v1235
    %v1241 = vadd.f32 %v1240, %v1238
    %v1242 = vrot.slane %v1241, 4
    %v1243 = vadd.f32 %v1241, %v1242
    %v1244 = vrot.slane %v1243, 2
    %v1245 = vadd.f32 %v1243, %v1244
    %v1246 = vrot.slane %v1245, 1
    %v1247 = vadd.f32 %v1245, %v1246
    %v1248 = vmul.f32 %v1247, %v977
    %v1249 = vmax.f32 %v978, %v1008
    %v1250 = vmax.f32 %v1249, %v1038
    %v1251 = vmax.f32 %v1250, %v1068
    %s1252 = sld [smem:[#allocation2]]
    %v1253 = vsub.f32 %v978, %v1251
    %v1254 = vmul.f32 %v1253, 1.442695
    %v1255 = vpow.pop %v1254
    %s1256 = scvt.s32.f32 1
    %v1257 = vadd.f32 %v1255, 0.0
    %v1258 = vstv %s1256
    %v1259 = vmul.f32 %v1255, %v1258
    %v1260 = vadd.f32 %v1259, 0.0
    %v1261 = vsub.f32 %v1008, %v1251
    %v1262 = vmul.f32 %v1261, 1.442695
    %v1263 = vpow.pop %v1262
    %s1264 = sld [smem:[#allocation2 + $0x1]]
    %p1265 = scmp.eq.s32.totalorder %s1264, %s1252
    %s1266 = scalar_select %p1265, 1, 0
    %s1267 = scvt.s32.f32 %s1266
    %v1268 = vadd.f32 %v1257, %v1263
    %v1269 = vstv %s1267
    %v1270 = vmul.f32 %v1263, %v1269
    %v1271 = vadd.f32 %v1260, %v1270
    %v1272 = vsub.f32 %v1038, %v1251
    %v1273 = vmul.f32 %v1272, 1.442695
    %v1274 = vpow.pop %v1273
    %s1275 = sld [smem:[#allocation2 + $0x2]]
    %p1276 = scmp.eq.s32.totalorder %s1275, %s1252
    %s1277 = scalar_select %p1276, 1, 0
    %s1278 = scvt.s32.f32 %s1277
    %v1279 = vadd.f32 %v1268, %v1274
    %v1280 = vstv %s1278
    %v1281 = vmul.f32 %v1274, %v1280
    %v1282 = vadd.f32 %v1271, %v1281
    %v1283 = vsub.f32 %v1068, %v1251
    %v1284 = vmul.f32 %v1283, 1.442695
    %v1285 = vpow.pop %v1284
    %s1286 = sld [smem:[#allocation2 + $0x3]]
    %p1287 = scmp.eq.s32.totalorder %s1286, %s1252
    %s1288 = scalar_select %p1287, 1, 0
    %s1289 = scvt.s32.f32 %s1288
    %v1290 = vadd.f32 %v1279, %v1285
    %v1291 = vstv %s1289
    %v1292 = vmul.f32 %v1285, %v1291
    %v1293 = vadd.f32 %v1282, %v1292
    %v1294 = vlog2.pop %v1290
    %v1295 = vmul.f32 %v1294, 0.6931472
    %v1296 = vlog2.pop %v1293
    %v1297 = vmul.f32 %v1296, 0.6931472
    %v1298 = vsub.f32 %v1295, %v1297
    %v1299 = vadd.f32 %v1298, 0.0
    %v1300 = vmax.f32 %v1008, %v1098
    %v1301 = vmax.f32 %v1300, %v1128
    %v1302 = vmax.f32 %v1301, %v1158
    %v1303 = vsub.f32 %v1008, %v1302
    %v1304 = vmul.f32 %v1303, 1.442695
    %v1305 = vpow.pop %v1304
    %p1306 = scmp.eq.s32.totalorder %s1252, %s1264
    %s1307 = scalar_select %p1306, 1, 0
    %s1308 = scvt.s32.f32 %s1307
    %v1309 = vadd.f32 %v1305, 0.0
    %v1310 = vstv %s1308
    %v1311 = vmul.f32 %v1305, %v1310
    %v1312 = vadd.f32 %v1311, 0.0
    %v1313 = vsub.f32 %v1098, %v1302
    %v1314 = vmul.f32 %v1313, 1.442695
    %v1315 = vpow.pop %v1314
    %v1316 = vadd.f32 %v1309, %v1315
    %v1317 = vmul.f32 %v1315, %v1258
    %v1318 = vadd.f32 %v1312, %v1317
    %v1319 = vsub.f32 %v1128, %v1302
    %v1320 = vmul.f32 %v1319, 1.442695
    %v1321 = vpow.pop %v1320
    %p1322 = scmp.eq.s32.totalorder %s1275, %s1264
    %s1323 = scalar_select %p1322, 1, 0
    %s1324 = scvt.s32.f32 %s1323
    %v1325 = vadd.f32 %v1316, %v1321
    %v1326 = vstv %s1324
    %v1327 = vmul.f32 %v1321, %v1326
    %v1328 = vadd.f32 %v1318, %v1327
    %v1329 = vsub.f32 %v1158, %v1302
    %v1330 = vmul.f32 %v1329, 1.442695
    %v1331 = vpow.pop %v1330
    %p1332 = scmp.eq.s32.totalorder %s1286, %s1264
    %s1333 = scalar_select %p1332, 1, 0
    %s1334 = scvt.s32.f32 %s1333
    %v1335 = vadd.f32 %v1325, %v1331
    %v1336 = vstv %s1334
    %v1337 = vmul.f32 %v1331, %v1336
    %v1338 = vadd.f32 %v1328, %v1337
    %v1339 = vlog2.pop %v1335
    %v1340 = vmul.f32 %v1339, 0.6931472
    %v1341 = vlog2.pop %v1338
    %v1342 = vmul.f32 %v1341, 0.6931472
    %v1343 = vsub.f32 %v1340, %v1342
    %v1344 = vadd.f32 %v1299, %v1343
    %v1345 = vmax.f32 %v1038, %v1128
    %v1346 = vmax.f32 %v1345, %v1188
    %v1347 = vmax.f32 %v1346, %v1218
    %v1348 = vsub.f32 %v1038, %v1347
    %v1349 = vmul.f32 %v1348, 1.442695
    %v1350 = vpow.pop %v1349
    %p1351 = scmp.eq.s32.totalorder %s1252, %s1275
    %s1352 = scalar_select %p1351, 1, 0
    %s1353 = scvt.s32.f32 %s1352
    %v1354 = vadd.f32 %v1350, 0.0
    %v1355 = vstv %s1353
    %v1356 = vmul.f32 %v1350, %v1355
    %v1357 = vadd.f32 %v1356, 0.0
    %v1358 = vsub.f32 %v1128, %v1347
    %v1359 = vmul.f32 %v1358, 1.442695
    %v1360 = vpow.pop %v1359
    %p1361 = scmp.eq.s32.totalorder %s1264, %s1275
    %s1362 = scalar_select %p1361, 1, 0
    %s1363 = scvt.s32.f32 %s1362
    %v1364 = vadd.f32 %v1354, %v1360
    %v1365 = vstv %s1363
    %v1366 = vmul.f32 %v1360, %v1365
    %v1367 = vadd.f32 %v1357, %v1366
    %v1368 = vsub.f32 %v1188, %v1347
    %v1369 = vmul.f32 %v1368, 1.442695
    %v1370 = vpow.pop %v1369
    %v1371 = vadd.f32 %v1364, %v1370
    %v1372 = vmul.f32 %v1370, %v1258
    %v1373 = vadd.f32 %v1367, %v1372
    %v1374 = vsub.f32 %v1218, %v1347
    %v1375 = vmul.f32 %v1374, 1.442695
    %v1376 = vpow.pop %v1375
    %p1377 = scmp.eq.s32.totalorder %s1286, %s1275
    %s1378 = scalar_select %p1377, 1, 0
    %s1379 = scvt.s32.f32 %s1378
    %v1380 = vadd.f32 %v1371, %v1376
    %v1381 = vstv %s1379
    %v1382 = vmul.f32 %v1376, %v1381
    %v1383 = vadd.f32 %v1373, %v1382
    %v1384 = vlog2.pop %v1380
    %v1385 = vmul.f32 %v1384, 0.6931472
    %v1386 = vlog2.pop %v1383
    %v1387 = vmul.f32 %v1386, 0.6931472
    %v1388 = vsub.f32 %v1385, %v1387
    %v1389 = vadd.f32 %v1344, %v1388
    %v1390 = vmax.f32 %v1068, %v1158
    %v1391 = vmax.f32 %v1390, %v1218
    %v1392 = vmax.f32 %v1391, %v1248
    %v1393 = vsub.f32 %v1068, %v1392
    %v1394 = vmul.f32 %v1393, 1.442695
    %v1395 = vpow.pop %v1394
    %p1396 = scmp.eq.s32.totalorder %s1252, %s1286
    %s1397 = scalar_select %p1396, 1, 0
    %s1398 = scvt.s32.f32 %s1397
    %v1399 = vadd.f32 %v1395, 0.0
    %v1400 = vstv %s1398
    %v1401 = vmul.f32 %v1395, %v1400
    %v1402 = vadd.f32 %v1401, 0.0
    %v1403 = vsub.f32 %v1158, %v1392
    %v1404 = vmul.f32 %v1403, 1.442695
    %v1405 = vpow.pop %v1404
    %p1406 = scmp.eq.s32.totalorder %s1264, %s1286
    %s1407 = scalar_select %p1406, 1, 0
    %s1408 = scvt.s32.f32 %s1407
    %v1409 = vadd.f32 %v1399, %v1405
    %v1410 = vstv %s1408
    %v1411 = vmul.f32 %v1405, %v1410
    %v1412 = vadd.f32 %v1402, %v1411
    %v1413 = vsub.f32 %v1218, %v1392
    %v1414 = vmul.f32 %v1413, 1.442695
    %v1415 = vpow.pop %v1414
    %p1416 = scmp.eq.s32.totalorder %s1275, %s1286
    %s1417 = scalar_select %p1416, 1, 0
    %s1418 = scvt.s32.f32 %s1417
    %v1419 = vadd.f32 %v1409, %v1415
    %v1420 = vstv %s1418
    %v1421 = vmul.f32 %v1415, %v1420
    %v1422 = vadd.f32 %v1412, %v1421
    %v1423 = vsub.f32 %v1248, %v1392
    %v1424 = vmul.f32 %v1423, 1.442695
    %v1425 = vpow.pop %v1424
    %v1426 = vadd.f32 %v1419, %v1425
    %v1427 = vmul.f32 %v1425, %v1258
    %v1428 = vadd.f32 %v1422, %v1427
    %v1429 = vlog2.pop %v1426
    %v1430 = vmul.f32 %v1429, 0.6931472
    %v1431 = vlog2.pop %v1428
    %v1432 = vmul.f32 %v1431, 0.6931472
    %v1433 = vsub.f32 %v1430, %v1432
    %v1434 = vadd.f32 %v1389, %v1433
    %v1435 = vrcp.pop 4.0
    %v1436 = vmul.f32 %v1434, %v1435
    %vm1437 = vcmask 0
    %1438 = vst.msk [vmem:[#allocation7] sm:$0x1] %vm1437, %v1436
    // Predicated region
    $region30: #{tpu_custom_call.1} parent=1 // pred_check
      _
    $region31: #{tpu_custom_call.1} parent=1 // pred_check_branch
      %1440 = sbr.rel (0) target = $region33
    $region32: #{tpu_custom_call.1} parent=1 // pred_region
      %s1442 = ssub.s32 16, 16
      %1443 = vsyncadd [#allocation4], %s1442
      %s1445 = sshll.u32 [#allocation7], 4
      %s1446 = int_to_ptr.vmem [resolvable:$true] %s1445
      %1448 = dma.vmem_to_hbm [thread:$0]  %s1446, 16, %s5, [#allocation4]
    $region33: #{tpu_custom_call.1} parent=1 // pred_fallthru
      _
    // Predicated region
    $region34: #{tpu_custom_call.1} parent=1 // pred_check
      _
    $region35: #{tpu_custom_call.1} parent=1 // pred_check_branch
      %1450 = sbr.rel (0) target = $region37
    $region36: #{tpu_custom_call.1} parent=1 // pred_region
      %1451 = dma.done [#allocation4], 16
    $region37: #{tpu_custom_call.1} parent=1 // pred_fallthru
      _
    %1452 = vsyncpa [#allocation3], 1
    %1453 = vsyncpa [#allocation4], 1
    %1454 = vsyncpa [#allocation5], 1

</llo_original>
